<compile_context>
chip_gen: v7x
topology: tpu7x:2x2x1
jax: 0.10.0
libtpu: 0.0.40
codegen_flags: <defaults>
</compile_context>

<pallas_src>
import math

import jax
import jax.numpy as jnp
from jax.experimental import pallas as pl
from jax.experimental.pallas import tpu as pltpu

# ---- model hyper-parameters (small, consistent with the module) ----
B = 2            # batch
S = 8            # sequence length
D_MODEL = 32     # d_model
NUM_HEADS = 4
HEAD_DIM = D_MODEL // NUM_HEADS
FF_HIDDEN = 64
LN_EPS = 1e-5

_BIAS_LANES = 128  # padded lane width for the packed bias/LN array


def _layer_norm(x, gamma, beta):
    # x: (N, D); gamma/beta: (1, D). PyTorch LayerNorm: biased variance, eps inside sqrt.
    mean = jnp.mean(x, axis=-1, keepdims=True)
    var = jnp.mean((x - mean) ** 2, axis=-1, keepdims=True)
    inv = jax.lax.rsqrt(var + LN_EPS)
    return (x - mean) * inv * gamma + beta


def transformer_block_kernel(x_ref, w_in_ref, w2_ref, bln_ref, o_ref, attn_sc):
    # ---- load inputs (single grid step; whole problem is resident) ----
    x = x_ref[...]                                   # (B, S, D)
    x2 = x.reshape(B * S, D_MODEL)                   # (B*S, D)

    w = w_in_ref[...]                                # (D, 3D + D + FF)
    w_qkv = w[:, 0:3 * D_MODEL]                      # (D, 3D)  (Wq pre-scaled)
    w_o = w[:, 3 * D_MODEL:4 * D_MODEL]              # (D, D)
    w_1 = w[:, 4 * D_MODEL:4 * D_MODEL + FF_HIDDEN]  # (D, FF)
    w_2 = w2_ref[...]                                # (FF, D)

    bln = bln_ref[...]                               # (8, 128), zero padded rows
    b_qkv = bln[0:1, 0:3 * D_MODEL]
    b_o = bln[1:2, 0:D_MODEL]
    b_1 = bln[2:3, 0:FF_HIDDEN]
    b_2 = bln[3:4, 0:D_MODEL]
    g1 = bln[4:5, 0:D_MODEL]
    be1 = bln[5:6, 0:D_MODEL]
    g2 = bln[6:7, 0:D_MODEL]
    be2 = bln[7:8, 0:D_MODEL]

    # ---- fused Q/K/V projection (scale already folded into Wq/bq) ----
    qkv = jnp.dot(x2, w_qkv, preferred_element_type=jnp.float32) + b_qkv  # (B*S, 3D)

    # ---- multi-head self-attention (mask=None in the reference forward) ----
    for h in range(NUM_HEADS):                       # static unroll over heads
        lo = h * HEAD_DIM
        hi = lo + HEAD_DIM
        qh = qkv[:, lo:hi].reshape(B, S, HEAD_DIM)                         # (B,S,hd)
        kh = qkv[:, D_MODEL + lo:D_MODEL + hi].reshape(B, S, HEAD_DIM)
        vh = qkv[:, 2 * D_MODEL + lo:2 * D_MODEL + hi].reshape(B, S, HEAD_DIM)

        # batched over B, contract on head_dim (no explicit transpose)
        s = jnp.einsum('bqd,bkd->bqk', qh, kh,
                       preferred_element_type=jnp.float32)                 # (B,S,S)
        m = jnp.max(s, axis=-1, keepdims=True)
        e = jnp.exp(s - m)
        p = e * pl.reciprocal(jnp.sum(e, axis=-1, keepdims=True), approx=True)
        oh = jnp.einsum('bqk,bkd->bqd', p, vh,
                        preferred_element_type=jnp.float32)                # (B,S,hd)
        # write head output into its contiguous lane slice (no concatenate)
        attn_sc[:, lo:hi] = oh.reshape(B * S, HEAD_DIM)

    attn_out = jnp.dot(attn_sc[...], w_o,
                       preferred_element_type=jnp.float32) + b_o           # (B*S, D)

    # TODO(synk): dropout omitted (identity / eval mode)
    y1 = _layer_norm(x2 + attn_out, g1, be1)

    # ---- feed-forward ----
    h1 = jnp.dot(y1, w_1, preferred_element_type=jnp.float32) + b_1
    h1 = jnp.maximum(h1, 0.0)
    ffn_out = jnp.dot(h1, w_2, preferred_element_type=jnp.float32) + b_2

    y2 = _layer_norm(y1 + ffn_out, g2, be2)
    o_ref[...] = y2.reshape(B, S, D_MODEL).astype(o_ref.dtype)


def _pack_params(params):
    """Pack the 16 small parameter arrays into 3 arrays (3 DMAs instead of 16)."""
    scale = 1.0 / math.sqrt(HEAD_DIM)
    wq = params["wq"] * scale          # fold 1/sqrt(head_dim) into the Q projection
    bq = params["bq"] * scale

    # (D, 3D + D + FF): [Wq | Wk | Wv | Wo | W1]
    w_in = jnp.concatenate(
        [wq, params["wk"], params["wv"], params["wo"], params["w1"]], axis=1)

    def pad_row(v):
        return jnp.pad(v, ((0, 0), (0, _BIAS_LANES - v.shape[-1])))

    b_qkv = jnp.concatenate([bq, params["bk"], params["bv"]], axis=1)   # (1, 3D)
    rows = [b_qkv, params["bo"], params["b1"], params["b2"],
            params["g1"], params["be1"], params["g2"], params["be2"]]
    bias_pack = jnp.concatenate([pad_row(r) for r in rows], axis=0)     # (8, 128)

    return w_in, params["w2"], bias_pack


def transformer_block(x, params):
    """x: (B, S, D) float32. params: dict of weights."""
    b, s, d = x.shape
    w_in, w2, bias_pack = _pack_params(params)

    in_specs = [
        pl.BlockSpec((b, s, d), lambda i: (0, 0, 0)),                     # x (full)
        pl.BlockSpec(w_in.shape, lambda i: (0, 0)),                       # packed W slab
        pl.BlockSpec(w2.shape, lambda i: (0, 0)),                         # W2
        pl.BlockSpec(bias_pack.shape, lambda i: (0, 0)),                  # packed bias/LN
    ]
    return pl.pallas_call(
        transformer_block_kernel,
        out_shape=jax.ShapeDtypeStruct((b, s, d), jnp.float32),
        grid_spec=pltpu.PrefetchScalarGridSpec(
            num_scalar_prefetch=0,
            grid=(1,),                      # batch folded into one kernel invocation
            in_specs=in_specs,
            out_specs=pl.BlockSpec((b, s, d), lambda i: (0, 0, 0)),
            scratch_shapes=[pltpu.VMEM((b * s, d), jnp.float32)],         # attn concat buffer
        ),
        compiler_params=pltpu.CompilerParams(
            dimension_semantics=("arbitrary",)),
    )(x, w_in, w2, bias_pack)


def _reference(x, p):
    """Pure-JAX reference matching the PyTorch forward (mask=None, dropout=identity)."""
    def ln(v, g, be):
        m = jnp.mean(v, -1, keepdims=True)
        var = jnp.mean((v - m) ** 2, -1, keepdims=True)
        return (v - m) / jnp.sqrt(var + LN_EPS) * g + be

    q = x @ p["wq"] + p["bq"]
    k = x @ p["wk"] + p["bk"]
    v = x @ p["wv"] + p["bv"]

    def split(t):  # (B,S,D) -> (B,H,S,hd)
        return t.reshape(B, S, NUM_HEADS, HEAD_DIM).transpose(0, 2, 1, 3)

    qh, kh, vh = split(q), split(k), split(v)
    scores = jnp.einsum("bhqd,bhkd->bhqk", qh, kh) / math.sqrt(HEAD_DIM)
    attn = jax.nn.softmax(scores, axis=-1)
    out = jnp.einsum("bhqk,bhkd->bhqd", attn, vh)
    out = out.transpose(0, 2, 1, 3).reshape(B, S, D_MODEL)
    attn_out = out @ p["wo"] + p["bo"]
    y1 = ln(x + attn_out, p["g1"], p["be1"])
    ffn = jnp.maximum(y1 @ p["w1"] + p["b1"], 0.0) @ p["w2"] + p["b2"]
    return ln(y1 + ffn, p["g2"], p["be2"])


def init_params(key):
    ks = jax.random.split(key, 12)

    def lin(kw, kb, fan_in, fan_out):
        bound = 1.0 / math.sqrt(fan_in)
        w = jax.random.uniform(kw, (fan_in, fan_out), jnp.float32, -bound, bound)
        b = jax.random.uniform(kb, (1, fan_out), jnp.float32, -bound, bound)
        return w, b

    wq, bq = lin(ks[0], ks[1], D_MODEL, D_MODEL)
    wk, bk = lin(ks[2], ks[3], D_MODEL, D_MODEL)
    wv, bv = lin(ks[4], ks[5], D_MODEL, D_MODEL)
    wo, bo = lin(ks[6], ks[7], D_MODEL, D_MODEL)
    w1, b1 = lin(ks[8], ks[9], D_MODEL, FF_HIDDEN)
    w2, b2 = lin(ks[10], ks[11], FF_HIDDEN, D_MODEL)
    return {
        "wq": wq, "bq": bq, "wk": wk, "bk": bk, "wv": wv, "bv": bv,
        "wo": wo, "bo": bo, "w1": w1, "b1": b1, "w2": w2, "b2": b2,
        # PyTorch LayerNorm defaults: weight=1, bias=0
        "g1": jnp.ones((1, D_MODEL), jnp.float32),
        "be1": jnp.zeros((1, D_MODEL), jnp.float32),
        "g2": jnp.ones((1, D_MODEL), jnp.float32),
        "be2": jnp.zeros((1, D_MODEL), jnp.float32),
    }


if __name__ == "__main__":
    key = jax.random.PRNGKey(0)
    kx, kp = jax.random.split(key)
    x = jax.random.normal(kx, (B, S, D_MODEL), jnp.float32)
    params = init_params(kp)

    out = transformer_block(x, params)
    out = jax.block_until_ready(out)

    ref = _reference(x, params)
    assert out.shape == (B, S, D_MODEL)
    # approx reciprocal in the softmax denominator -> slightly looser tolerance
    assert jnp.max(jnp.abs(out - ref)) < 2e-3, "mismatch vs pure-JAX reference"
    print("KERNEL_OK")
</pallas_src>

<mosaic_0001>
module attributes {stable_mosaic.version = 11 : i64} {
  func.func @transformer_block_kernel(%arg0: i32, %arg1: memref<2x8x32xf32, #tpu.memory_space<vmem>>, %arg2: memref<32x192xf32, #tpu.memory_space<vmem>>, %arg3: memref<64x32xf32, #tpu.memory_space<vmem>>, %arg4: memref<8x128xf32, #tpu.memory_space<vmem>>, %arg5: memref<2x8x32xf32, #tpu.memory_space<vmem>>, %arg6: memref<16x32xf32, #tpu.memory_space<vmem>>) attributes {dimension_semantics = [#tpu.dimension_semantics<arbitrary>], iteration_bounds = array<i64: 1>, scalar_prefetch = 0 : i64, scratch_operands = 1 : i64, tpu.core_type = #tpu.core_type<tc>, window_params = [{pipeline_mode = #tpu.pipeline_mode<synchronous>, transform_indices = @transform_0, window_bounds = array<i64: 2, 8, 32>}, {pipeline_mode = #tpu.pipeline_mode<synchronous>, transform_indices = @transform_1, window_bounds = array<i64: 32, 192>}, {pipeline_mode = #tpu.pipeline_mode<synchronous>, transform_indices = @transform_2, window_bounds = array<i64: 64, 32>}, {pipeline_mode = #tpu.pipeline_mode<synchronous>, transform_indices = @transform_3, window_bounds = array<i64: 8, 128>}, {pipeline_mode = #tpu.pipeline_mode<synchronous>, transform_indices = @transform_4, window_bounds = array<i64: 2, 8, 32>}]} {
    %c0 = arith.constant 0 : index
    %c0_0 = arith.constant 0 : index
    %c0_1 = arith.constant 0 : index
    %0 = vector.load %arg1[%c0, %c0_0, %c0_1] : memref<2x8x32xf32, #tpu.memory_space<vmem>>, vector<2x8x32xf32>
    %1 = vector.shape_cast %0 : vector<2x8x32xf32> to vector<16x32xf32>
    %c0_2 = arith.constant 0 : index
    %c0_3 = arith.constant 0 : index
    %2 = vector.load %arg2[%c0_2, %c0_3] : memref<32x192xf32, #tpu.memory_space<vmem>>, vector<32x192xf32>
    %3 = vector.extract_strided_slice %2 {offsets = [0, 0], sizes = [32, 96], strides = [1, 1]} : vector<32x192xf32> to vector<32x96xf32>
    %4 = vector.extract_strided_slice %2 {offsets = [0, 96], sizes = [32, 32], strides = [1, 1]} : vector<32x192xf32> to vector<32x32xf32>
    %5 = vector.extract_strided_slice %2 {offsets = [0, 128], sizes = [32, 64], strides = [1, 1]} : vector<32x192xf32> to vector<32x64xf32>
    %c0_4 = arith.constant 0 : index
    %c0_5 = arith.constant 0 : index
    %6 = vector.load %arg3[%c0_4, %c0_5] : memref<64x32xf32, #tpu.memory_space<vmem>>, vector<64x32xf32>
    %c0_6 = arith.constant 0 : index
    %c0_7 = arith.constant 0 : index
    %7 = vector.load %arg4[%c0_6, %c0_7] : memref<8x128xf32, #tpu.memory_space<vmem>>, vector<8x128xf32>
    %8 = vector.extract_strided_slice %7 {offsets = [0, 0], sizes = [1, 96], strides = [1, 1]} : vector<8x128xf32> to vector<1x96xf32>
    %9 = vector.extract_strided_slice %7 {offsets = [1, 0], sizes = [1, 32], strides = [1, 1]} : vector<8x128xf32> to vector<1x32xf32>
    %10 = vector.extract_strided_slice %7 {offsets = [2, 0], sizes = [1, 64], strides = [1, 1]} : vector<8x128xf32> to vector<1x64xf32>
    %11 = vector.extract_strided_slice %7 {offsets = [3, 0], sizes = [1, 32], strides = [1, 1]} : vector<8x128xf32> to vector<1x32xf32>
    %12 = vector.extract_strided_slice %7 {offsets = [4, 0], sizes = [1, 32], strides = [1, 1]} : vector<8x128xf32> to vector<1x32xf32>
    %13 = vector.extract_strided_slice %7 {offsets = [5, 0], sizes = [1, 32], strides = [1, 1]} : vector<8x128xf32> to vector<1x32xf32>
    %14 = vector.extract_strided_slice %7 {offsets = [6, 0], sizes = [1, 32], strides = [1, 1]} : vector<8x128xf32> to vector<1x32xf32>
    %15 = vector.extract_strided_slice %7 {offsets = [7, 0], sizes = [1, 32], strides = [1, 1]} : vector<8x128xf32> to vector<1x32xf32>
    %cst = arith.constant dense<0.000000e+00> : vector<16x96xf32>
    %16 = tpu.matmul %1, %3, %cst {dimension_numbers = #tpu.dot_dimension_numbers<[1], [0], [0], [1], [0, 0, 1, 1], [], []>} : vector<16x32xf32>, vector<32x96xf32>, vector<16x96xf32> -> vector<16x96xf32>
    %17 = vector.broadcast %8 : vector<1x96xf32> to vector<16x96xf32>
    %18 = arith.addf %16, %17 : vector<16x96xf32>
    %19 = vector.extract_strided_slice %18 {offsets = [0, 0], sizes = [16, 8], strides = [1, 1]} : vector<16x96xf32> to vector<16x8xf32>
    %20 = vector.shape_cast %19 : vector<16x8xf32> to vector<2x8x8xf32>
    %21 = vector.extract_strided_slice %18 {offsets = [0, 32], sizes = [16, 8], strides = [1, 1]} : vector<16x96xf32> to vector<16x8xf32>
    %22 = vector.shape_cast %21 : vector<16x8xf32> to vector<2x8x8xf32>
    %23 = vector.extract_strided_slice %18 {offsets = [0, 64], sizes = [16, 8], strides = [1, 1]} : vector<16x96xf32> to vector<16x8xf32>
    %24 = vector.shape_cast %23 : vector<16x8xf32> to vector<2x8x8xf32>
    "tpu.trace_start"() <{level = 10 : i32, message = "bqd,bkd->bqk"}> : () -> ()
    %cst_8 = arith.constant dense<0.000000e+00> : vector<2x8x8xf32>
    %25 = tpu.matmul %20, %22, %cst_8 {dimension_numbers = #tpu.dot_dimension_numbers<[2], [2], [1], [1], [0, 0, 0, 1, 1, 1], [0], [0]>} : vector<2x8x8xf32>, vector<2x8x8xf32>, vector<2x8x8xf32> -> vector<2x8x8xf32>
    "tpu.trace_stop"() : () -> ()
    %cst_9 = arith.constant dense<0xFF800000> : vector<2x8xf32>
    %26 = vector.multi_reduction <maximumf>, %25, %cst_9 [2] : vector<2x8x8xf32> to vector<2x8xf32>
    %27 = vector.shape_cast %26 : vector<2x8xf32> to vector<2x8x1xf32>
    %28 = vector.broadcast %27 : vector<2x8x1xf32> to vector<2x8x8xf32>
    %29 = arith.subf %25, %28 : vector<2x8x8xf32>
    %30 = math.exp %29 : vector<2x8x8xf32>
    %cst_10 = arith.constant dense<0.000000e+00> : vector<2x8xf32>
    %31 = vector.multi_reduction <add>, %30, %cst_10 [2] : vector<2x8x8xf32> to vector<2x8xf32>
    %32 = vector.shape_cast %31 : vector<2x8xf32> to vector<2x8x1xf32>
    %33 = tpu.reciprocal %32 {approx = true} : vector<2x8x1xf32> -> vector<2x8x1xf32>
    %34 = vector.broadcast %33 : vector<2x8x1xf32> to vector<2x8x8xf32>
    %35 = arith.mulf %30, %34 : vector<2x8x8xf32>
    "tpu.trace_start"() <{level = 10 : i32, message = "bqk,bkd->bqd"}> : () -> ()
    %cst_11 = arith.constant dense<0.000000e+00> : vector<2x8x8xf32>
    %36 = tpu.matmul %35, %24, %cst_11 {dimension_numbers = #tpu.dot_dimension_numbers<[2], [1], [1], [2], [0, 0, 0, 1, 1, 2], [0], [0]>} : vector<2x8x8xf32>, vector<2x8x8xf32>, vector<2x8x8xf32> -> vector<2x8x8xf32>
    "tpu.trace_stop"() : () -> ()
    %37 = vector.shape_cast %36 : vector<2x8x8xf32> to vector<16x8xf32>
    %c0_12 = arith.constant 0 : index
    %c0_13 = arith.constant 0 : index
    %38 = vector.load %arg6[%c0_12, %c0_13] : memref<16x32xf32, #tpu.memory_space<vmem>>, vector<16x8xf32>
    tpu.vector_store %arg6[%c0_12, %c0_13], %37 {strides = array<i32>} : memref<16x32xf32, #tpu.memory_space<vmem>>, vector<16x8xf32>,
    %39 = vector.extract_strided_slice %18 {offsets = [0, 8], sizes = [16, 8], strides = [1, 1]} : vector<16x96xf32> to vector<16x8xf32>
    %40 = vector.shape_cast %39 : vector<16x8xf32> to vector<2x8x8xf32>
    %41 = vector.extract_strided_slice %18 {offsets = [0, 40], sizes = [16, 8], strides = [1, 1]} : vector<16x96xf32> to vector<16x8xf32>
    %42 = vector.shape_cast %41 : vector<16x8xf32> to vector<2x8x8xf32>
    %43 = vector.extract_strided_slice %18 {offsets = [0, 72], sizes = [16, 8], strides = [1, 1]} : vector<16x96xf32> to vector<16x8xf32>
    %44 = vector.shape_cast %43 : vector<16x8xf32> to vector<2x8x8xf32>
    "tpu.trace_start"() <{level = 10 : i32, message = "bqd,bkd->bqk"}> : () -> ()
    %cst_14 = arith.constant dense<0.000000e+00> : vector<2x8x8xf32>
    %45 = tpu.matmul %40, %42, %cst_14 {dimension_numbers = #tpu.dot_dimension_numbers<[2], [2], [1], [1], [0, 0, 0, 1, 1, 1], [0], [0]>} : vector<2x8x8xf32>, vector<2x8x8xf32>, vector<2x8x8xf32> -> vector<2x8x8xf32>
    "tpu.trace_stop"() : () -> ()
    %cst_15 = arith.constant dense<0xFF800000> : vector<2x8xf32>
    %46 = vector.multi_reduction <maximumf>, %45, %cst_15 [2] : vector<2x8x8xf32> to vector<2x8xf32>
    %47 = vector.shape_cast %46 : vector<2x8xf32> to vector<2x8x1xf32>
    %48 = vector.broadcast %47 : vector<2x8x1xf32> to vector<2x8x8xf32>
    %49 = arith.subf %45, %48 : vector<2x8x8xf32>
    %50 = math.exp %49 : vector<2x8x8xf32>
    %cst_16 = arith.constant dense<0.000000e+00> : vector<2x8xf32>
    %51 = vector.multi_reduction <add>, %50, %cst_16 [2] : vector<2x8x8xf32> to vector<2x8xf32>
    %52 = vector.shape_cast %51 : vector<2x8xf32> to vector<2x8x1xf32>
    %53 = tpu.reciprocal %52 {approx = true} : vector<2x8x1xf32> -> vector<2x8x1xf32>
    %54 = vector.broadcast %53 : vector<2x8x1xf32> to vector<2x8x8xf32>
    %55 = arith.mulf %50, %54 : vector<2x8x8xf32>
    "tpu.trace_start"() <{level = 10 : i32, message = "bqk,bkd->bqd"}> : () -> ()
    %cst_17 = arith.constant dense<0.000000e+00> : vector<2x8x8xf32>
    %56 = tpu.matmul %55, %44, %cst_17 {dimension_numbers = #tpu.dot_dimension_numbers<[2], [1], [1], [2], [0, 0, 0, 1, 1, 2], [0], [0]>} : vector<2x8x8xf32>, vector<2x8x8xf32>, vector<2x8x8xf32> -> vector<2x8x8xf32>
    "tpu.trace_stop"() : () -> ()
    %57 = vector.shape_cast %56 : vector<2x8x8xf32> to vector<16x8xf32>
    %c0_18 = arith.constant 0 : index
    %c8 = arith.constant 8 : index
    %58 = vector.load %arg6[%c0_18, %c8] : memref<16x32xf32, #tpu.memory_space<vmem>>, vector<16x8xf32>
    tpu.vector_store %arg6[%c0_18, %c8], %57 {strides = array<i32>} : memref<16x32xf32, #tpu.memory_space<vmem>>, vector<16x8xf32>,
    %59 = vector.extract_strided_slice %18 {offsets = [0, 16], sizes = [16, 8], strides = [1, 1]} : vector<16x96xf32> to vector<16x8xf32>
    %60 = vector.shape_cast %59 : vector<16x8xf32> to vector<2x8x8xf32>
    %61 = vector.extract_strided_slice %18 {offsets = [0, 48], sizes = [16, 8], strides = [1, 1]} : vector<16x96xf32> to vector<16x8xf32>
    %62 = vector.shape_cast %61 : vector<16x8xf32> to vector<2x8x8xf32>
    %63 = vector.extract_strided_slice %18 {offsets = [0, 80], sizes = [16, 8], strides = [1, 1]} : vector<16x96xf32> to vector<16x8xf32>
    %64 = vector.shape_cast %63 : vector<16x8xf32> to vector<2x8x8xf32>
    "tpu.trace_start"() <{level = 10 : i32, message = "bqd,bkd->bqk"}> : () -> ()
    %cst_19 = arith.constant dense<0.000000e+00> : vector<2x8x8xf32>
    %65 = tpu.matmul %60, %62, %cst_19 {dimension_numbers = #tpu.dot_dimension_numbers<[2], [2], [1], [1], [0, 0, 0, 1, 1, 1], [0], [0]>} : vector<2x8x8xf32>, vector<2x8x8xf32>, vector<2x8x8xf32> -> vector<2x8x8xf32>
    "tpu.trace_stop"() : () -> ()
    %cst_20 = arith.constant dense<0xFF800000> : vector<2x8xf32>
    %66 = vector.multi_reduction <maximumf>, %65, %cst_20 [2] : vector<2x8x8xf32> to vector<2x8xf32>
    %67 = vector.shape_cast %66 : vector<2x8xf32> to vector<2x8x1xf32>
    %68 = vector.broadcast %67 : vector<2x8x1xf32> to vector<2x8x8xf32>
    %69 = arith.subf %65, %68 : vector<2x8x8xf32>
    %70 = math.exp %69 : vector<2x8x8xf32>
    %cst_21 = arith.constant dense<0.000000e+00> : vector<2x8xf32>
    %71 = vector.multi_reduction <add>, %70, %cst_21 [2] : vector<2x8x8xf32> to vector<2x8xf32>
    %72 = vector.shape_cast %71 : vector<2x8xf32> to vector<2x8x1xf32>
    %73 = tpu.reciprocal %72 {approx = true} : vector<2x8x1xf32> -> vector<2x8x1xf32>
    %74 = vector.broadcast %73 : vector<2x8x1xf32> to vector<2x8x8xf32>
    %75 = arith.mulf %70, %74 : vector<2x8x8xf32>
    "tpu.trace_start"() <{level = 10 : i32, message = "bqk,bkd->bqd"}> : () -> ()
    %cst_22 = arith.constant dense<0.000000e+00> : vector<2x8x8xf32>
    %76 = tpu.matmul %75, %64, %cst_22 {dimension_numbers = #tpu.dot_dimension_numbers<[2], [1], [1], [2], [0, 0, 0, 1, 1, 2], [0], [0]>} : vector<2x8x8xf32>, vector<2x8x8xf32>, vector<2x8x8xf32> -> vector<2x8x8xf32>
    "tpu.trace_stop"() : () -> ()
    %77 = vector.shape_cast %76 : vector<2x8x8xf32> to vector<16x8xf32>
    %c0_23 = arith.constant 0 : index
    %c16 = arith.constant 16 : index
    %78 = vector.load %arg6[%c0_23, %c16] : memref<16x32xf32, #tpu.memory_space<vmem>>, vector<16x8xf32>
    tpu.vector_store %arg6[%c0_23, %c16], %77 {strides = array<i32>} : memref<16x32xf32, #tpu.memory_space<vmem>>, vector<16x8xf32>,
    %79 = vector.extract_strided_slice %18 {offsets = [0, 24], sizes = [16, 8], strides = [1, 1]} : vector<16x96xf32> to vector<16x8xf32>
    %80 = vector.shape_cast %79 : vector<16x8xf32> to vector<2x8x8xf32>
    %81 = vector.extract_strided_slice %18 {offsets = [0, 56], sizes = [16, 8], strides = [1, 1]} : vector<16x96xf32> to vector<16x8xf32>
    %82 = vector.shape_cast %81 : vector<16x8xf32> to vector<2x8x8xf32>
    %83 = vector.extract_strided_slice %18 {offsets = [0, 88], sizes = [16, 8], strides = [1, 1]} : vector<16x96xf32> to vector<16x8xf32>
    %84 = vector.shape_cast %83 : vector<16x8xf32> to vector<2x8x8xf32>
    "tpu.trace_start"() <{level = 10 : i32, message = "bqd,bkd->bqk"}> : () -> ()
    %cst_24 = arith.constant dense<0.000000e+00> : vector<2x8x8xf32>
    %85 = tpu.matmul %80, %82, %cst_24 {dimension_numbers = #tpu.dot_dimension_numbers<[2], [2], [1], [1], [0, 0, 0, 1, 1, 1], [0], [0]>} : vector<2x8x8xf32>, vector<2x8x8xf32>, vector<2x8x8xf32> -> vector<2x8x8xf32>
    "tpu.trace_stop"() : () -> ()
    %cst_25 = arith.constant dense<0xFF800000> : vector<2x8xf32>
    %86 = vector.multi_reduction <maximumf>, %85, %cst_25 [2] : vector<2x8x8xf32> to vector<2x8xf32>
    %87 = vector.shape_cast %86 : vector<2x8xf32> to vector<2x8x1xf32>
    %88 = vector.broadcast %87 : vector<2x8x1xf32> to vector<2x8x8xf32>
    %89 = arith.subf %85, %88 : vector<2x8x8xf32>
    %90 = math.exp %89 : vector<2x8x8xf32>
    %cst_26 = arith.constant dense<0.000000e+00> : vector<2x8xf32>
    %91 = vector.multi_reduction <add>, %90, %cst_26 [2] : vector<2x8x8xf32> to vector<2x8xf32>
    %92 = vector.shape_cast %91 : vector<2x8xf32> to vector<2x8x1xf32>
    %93 = tpu.reciprocal %92 {approx = true} : vector<2x8x1xf32> -> vector<2x8x1xf32>
    %94 = vector.broadcast %93 : vector<2x8x1xf32> to vector<2x8x8xf32>
    %95 = arith.mulf %90, %94 : vector<2x8x8xf32>
    "tpu.trace_start"() <{level = 10 : i32, message = "bqk,bkd->bqd"}> : () -> ()
    %cst_27 = arith.constant dense<0.000000e+00> : vector<2x8x8xf32>
    %96 = tpu.matmul %95, %84, %cst_27 {dimension_numbers = #tpu.dot_dimension_numbers<[2], [1], [1], [2], [0, 0, 0, 1, 1, 2], [0], [0]>} : vector<2x8x8xf32>, vector<2x8x8xf32>, vector<2x8x8xf32> -> vector<2x8x8xf32>
    "tpu.trace_stop"() : () -> ()
    %97 = vector.shape_cast %96 : vector<2x8x8xf32> to vector<16x8xf32>
    %c0_28 = arith.constant 0 : index
    %c24 = arith.constant 24 : index
    %98 = vector.load %arg6[%c0_28, %c24] : memref<16x32xf32, #tpu.memory_space<vmem>>, vector<16x8xf32>
    tpu.vector_store %arg6[%c0_28, %c24], %97 {strides = array<i32>} : memref<16x32xf32, #tpu.memory_space<vmem>>, vector<16x8xf32>,
    %c0_29 = arith.constant 0 : index
    %c0_30 = arith.constant 0 : index
    %99 = vector.load %arg6[%c0_29, %c0_30] : memref<16x32xf32, #tpu.memory_space<vmem>>, vector<16x32xf32>
    %cst_31 = arith.constant dense<0.000000e+00> : vector<16x32xf32>
    %100 = tpu.matmul %99, %4, %cst_31 {dimension_numbers = #tpu.dot_dimension_numbers<[1], [0], [0], [1], [0, 0, 1, 1], [], []>} : vector<16x32xf32>, vector<32x32xf32>, vector<16x32xf32> -> vector<16x32xf32>
    %101 = vector.broadcast %9 : vector<1x32xf32> to vector<16x32xf32>
    %102 = arith.addf %100, %101 : vector<16x32xf32>
    %103 = arith.addf %1, %102 : vector<16x32xf32>
    %cst_32 = arith.constant dense<0.000000e+00> : vector<16xf32>
    %104 = vector.multi_reduction <add>, %103, %cst_32 [1] : vector<16x32xf32> to vector<16xf32>
    %105 = vector.shape_cast %104 : vector<16xf32> to vector<16x1xf32>
    %cst_33 = arith.constant 3.200000e+01 : f32
    %106 = vector.broadcast %cst_33 : f32 to vector<16x1xf32>
    %107 = arith.divf %105, %106 : vector<16x1xf32>
    %108 = vector.broadcast %107 : vector<16x1xf32> to vector<16x32xf32>
    %109 = arith.subf %103, %108 : vector<16x32xf32>
    %110 = arith.mulf %109, %109 : vector<16x32xf32>
    %cst_34 = arith.constant dense<0.000000e+00> : vector<16xf32>
    %111 = vector.multi_reduction <add>, %110, %cst_34 [1] : vector<16x32xf32> to vector<16xf32>
    %112 = vector.shape_cast %111 : vector<16xf32> to vector<16x1xf32>
    %cst_35 = arith.constant 3.200000e+01 : f32
    %113 = vector.broadcast %cst_35 : f32 to vector<16x1xf32>
    %114 = arith.divf %112, %113 : vector<16x1xf32>
    %cst_36 = arith.constant 9.99999974E-6 : f32
    %115 = vector.broadcast %cst_36 : f32 to vector<16x1xf32>
    %116 = arith.addf %114, %115 : vector<16x1xf32>
    %117 = math.rsqrt %116 : vector<16x1xf32>
    %118 = vector.broadcast %107 : vector<16x1xf32> to vector<16x32xf32>
    %119 = arith.subf %103, %118 : vector<16x32xf32>
    %120 = vector.broadcast %117 : vector<16x1xf32> to vector<16x32xf32>
    %121 = arith.mulf %119, %120 : vector<16x32xf32>
    %122 = vector.broadcast %12 : vector<1x32xf32> to vector<16x32xf32>
    %123 = arith.mulf %121, %122 : vector<16x32xf32>
    %124 = vector.broadcast %13 : vector<1x32xf32> to vector<16x32xf32>
    %125 = arith.addf %123, %124 : vector<16x32xf32>
    %cst_37 = arith.constant dense<0.000000e+00> : vector<16x64xf32>
    %126 = tpu.matmul %125, %5, %cst_37 {dimension_numbers = #tpu.dot_dimension_numbers<[1], [0], [0], [1], [0, 0, 1, 1], [], []>} : vector<16x32xf32>, vector<32x64xf32>, vector<16x64xf32> -> vector<16x64xf32>
    %127 = vector.broadcast %10 : vector<1x64xf32> to vector<16x64xf32>
    %128 = arith.addf %126, %127 : vector<16x64xf32>
    %cst_38 = arith.constant 0.000000e+00 : f32
    %129 = vector.broadcast %cst_38 : f32 to vector<16x64xf32>
    %130 = arith.maximumf %128, %129 : vector<16x64xf32>
    %cst_39 = arith.constant dense<0.000000e+00> : vector<16x32xf32>
    %131 = tpu.matmul %130, %6, %cst_39 {dimension_numbers = #tpu.dot_dimension_numbers<[1], [0], [0], [1], [0, 0, 1, 1], [], []>} : vector<16x64xf32>, vector<64x32xf32>, vector<16x32xf32> -> vector<16x32xf32>
    %132 = vector.broadcast %11 : vector<1x32xf32> to vector<16x32xf32>
    %133 = arith.addf %131, %132 : vector<16x32xf32>
    %134 = arith.addf %125, %133 : vector<16x32xf32>
    %cst_40 = arith.constant dense<0.000000e+00> : vector<16xf32>
    %135 = vector.multi_reduction <add>, %134, %cst_40 [1] : vector<16x32xf32> to vector<16xf32>
    %136 = vector.shape_cast %135 : vector<16xf32> to vector<16x1xf32>
    %cst_41 = arith.constant 3.200000e+01 : f32
    %137 = vector.broadcast %cst_41 : f32 to vector<16x1xf32>
    %138 = arith.divf %136, %137 : vector<16x1xf32>
    %139 = vector.broadcast %138 : vector<16x1xf32> to vector<16x32xf32>
    %140 = arith.subf %134, %139 : vector<16x32xf32>
    %141 = arith.mulf %140, %140 : vector<16x32xf32>
    %cst_42 = arith.constant dense<0.000000e+00> : vector<16xf32>
    %142 = vector.multi_reduction <add>, %141, %cst_42 [1] : vector<16x32xf32> to vector<16xf32>
    %143 = vector.shape_cast %142 : vector<16xf32> to vector<16x1xf32>
    %cst_43 = arith.constant 3.200000e+01 : f32
    %144 = vector.broadcast %cst_43 : f32 to vector<16x1xf32>
    %145 = arith.divf %143, %144 : vector<16x1xf32>
    %cst_44 = arith.constant 9.99999974E-6 : f32
    %146 = vector.broadcast %cst_44 : f32 to vector<16x1xf32>
    %147 = arith.addf %145, %146 : vector<16x1xf32>
    %148 = math.rsqrt %147 : vector<16x1xf32>
    %149 = vector.broadcast %138 : vector<16x1xf32> to vector<16x32xf32>
    %150 = arith.subf %134, %149 : vector<16x32xf32>
    %151 = vector.broadcast %148 : vector<16x1xf32> to vector<16x32xf32>
    %152 = arith.mulf %150, %151 : vector<16x32xf32>
    %153 = vector.broadcast %14 : vector<1x32xf32> to vector<16x32xf32>
    %154 = arith.mulf %152, %153 : vector<16x32xf32>
    %155 = vector.broadcast %15 : vector<1x32xf32> to vector<16x32xf32>
    %156 = arith.addf %154, %155 : vector<16x32xf32>
    %157 = vector.shape_cast %156 : vector<16x32xf32> to vector<2x8x32xf32>
    %c0_45 = arith.constant 0 : index
    %c0_46 = arith.constant 0 : index
    %c0_47 = arith.constant 0 : index
    %158 = vector.load %arg5[%c0_45, %c0_46, %c0_47] : memref<2x8x32xf32, #tpu.memory_space<vmem>>, vector<2x8x32xf32>
    tpu.vector_store %arg5[%c0_45, %c0_46, %c0_47], %157 {strides = array<i32>} : memref<2x8x32xf32, #tpu.memory_space<vmem>>, vector<2x8x32xf32>,
    return
  }
  func.func @transform_0(%arg0: i32) -> (i32, i32, i32) {
    %c0_i32 = arith.constant 0 : i32
    %c0_i32_0 = arith.constant 0 : i32
    %c0_i32_1 = arith.constant 0 : i32
    %c0_i32_2 = arith.constant 0 : i32
    return %c0_i32, %c0_i32_0, %c0_i32_1 : i32, i32, i32
  }
  func.func @transform_1(%arg0: i32) -> (i32, i32) {
    %c0_i32 = arith.constant 0 : i32
    %c0_i32_0 = arith.constant 0 : i32
    %c0_i32_1 = arith.constant 0 : i32
    return %c0_i32, %c0_i32_0 : i32, i32
  }
  func.func @transform_2(%arg0: i32) -> (i32, i32) {
    %c0_i32 = arith.constant 0 : i32
    %c0_i32_0 = arith.constant 0 : i32
    %c0_i32_1 = arith.constant 0 : i32
    return %c0_i32, %c0_i32_0 : i32, i32
  }
  func.func @transform_3(%arg0: i32) -> (i32, i32) {
    %c0_i32 = arith.constant 0 : i32
    %c0_i32_0 = arith.constant 0 : i32
    %c0_i32_1 = arith.constant 0 : i32
    return %c0_i32, %c0_i32_0 : i32, i32
  }
  func.func @transform_4(%arg0: i32) -> (i32, i32, i32) {
    %c0_i32 = arith.constant 0 : i32
    %c0_i32_0 = arith.constant 0 : i32
    %c0_i32_1 = arith.constant 0 : i32
    %c0_i32_2 = arith.constant 0 : i32
    return %c0_i32, %c0_i32_0, %c0_i32_1 : i32, i32, i32
  }
}

</mosaic_0001>

<llo_original>
// kernel: tpu_custom_call.1
$region0: #{tpu_custom_call.1}
  #allocation0 [shape = 'u32[]', space=smem, size = 0x4, offset = 0x4, fixed_abs, tag = 'smem constant byte address 0x4 - core index']
  #allocation1 [shape = 'u32[144,128]{1,0:T(1,128)}', space=vmem, size = 0x12000, scoped, tag = 'internal scratch']
  #allocation2 [shape = 'f32[16,32]{1,0:T(8,128)}', space=vmem, size = 0x2000, scoped, tag = 'scratch operand']
  %s0 = inlined_call_operand.vmem [shape: f32[2,8,32], index: 0, kind: input, shape index: {}]
  %s1 = inlined_call_operand.vmem [shape: f32[32,192], index: 1, kind: input, shape index: {}]
  %s2 = inlined_call_operand.vmem [shape: f32[64,32], index: 2, kind: input, shape index: {}]
  %s3 = inlined_call_operand.vmem [shape: f32[8,128], index: 3, kind: input, shape index: {}]
  %s4 = inlined_call_operand.hbm [shape: f32[2,8,32], index: 4, kind: output, shape index: {}]
  %s5 = sld [smem:[#allocation0]]
  $region26: #{tpu_custom_call.1} parent=0
    _
  %s7 = ssub.s32 1, %s5
  %s8 = scalar_select 0, %s7, %s5
  $region1: #{tpu_custom_call.1} parent=0
    #allocation3 [shape = 'u8[8192]{0}', space=vmem, size = 0x2000, scoped, tag = 'output window, operand 0, single buffered']
    #allocation4 [shape = 's32[1]{0}', space=sflag, size = 0x4, scoped, tag = 'scoped memory for tpu_custom_call.1']
    %9 = vsyncpa [#allocation4], 0
    // Predicated region
    $region2: #{tpu_custom_call.1} parent=1 // pred_check
      _
    $region3: #{tpu_custom_call.1} parent=1 // pred_check_branch
      %11 = sbr.rel (0) target = $region5
    $region4: #{tpu_custom_call.1} parent=1 // pred_region
      _
    $region5: #{tpu_custom_call.1} parent=1 // pred_fallthru
      _
    // Predicated region
    $region6: #{tpu_custom_call.1} parent=1 // pred_check
      _
    $region7: #{tpu_custom_call.1} parent=1 // pred_check_branch
      %13 = sbr.rel (0) target = $region9
    $region8: #{tpu_custom_call.1} parent=1 // pred_region
      _
    $region9: #{tpu_custom_call.1} parent=1 // pred_fallthru
      _
    // Predicated region
    $region10: #{tpu_custom_call.1} parent=1 // pred_check
      _
    $region11: #{tpu_custom_call.1} parent=1 // pred_check_branch
      %15 = sbr.rel (0) target = $region13
    $region12: #{tpu_custom_call.1} parent=1 // pred_region
      _
    $region13: #{tpu_custom_call.1} parent=1 // pred_fallthru
      _
    // Predicated region
    $region14: #{tpu_custom_call.1} parent=1 // pred_check
      _
    $region15: #{tpu_custom_call.1} parent=1 // pred_check_branch
      %17 = sbr.rel (0) target = $region17
    $region16: #{tpu_custom_call.1} parent=1 // pred_region
      _
    $region17: #{tpu_custom_call.1} parent=1 // pred_fallthru
      _
    %v18 = vld [vmem:[%s0] sm:$0xff]
    %v19 = vld [vmem:[%s0 + $0x8] sm:$0xff]
    %v20 = vld [vmem:[%s1] sm:$0xff]
    %v21 = vld [vmem:[%s1 + $0x8] sm:$0xff]
    %v22 = vld [vmem:[%s1 + $0x10] sm:$0xff]
    %v23 = vld [vmem:[%s1 + $0x18] sm:$0xff]
    %v24 = vld [vmem:[%s1 + $0x20] sm:$0xff]
    %v25 = vld [vmem:[%s1 + $0x28] sm:$0xff]
    %v26 = vld [vmem:[%s1 + $0x30] sm:$0xff]
    %v27 = vld [vmem:[%s1 + $0x38] sm:$0xff]
    %v28 = vld [vmem:[%s2] sm:$0xff]
    %v29 = vld [vmem:[%s2 + $0x8] sm:$0xff]
    %v30 = vld [vmem:[%s2 + $0x10] sm:$0xff]
    %v31 = vld [vmem:[%s2 + $0x18] sm:$0xff]
    %v32 = vld [vmem:[%s2 + $0x20] sm:$0xff]
    %v33 = vld [vmem:[%s2 + $0x28] sm:$0xff]
    %v34 = vld [vmem:[%s2 + $0x30] sm:$0xff]
    %v35 = vld [vmem:[%s2 + $0x38] sm:$0xff]
    %v36 = vld [vmem:[%s3] sm:$0xff]
    %v37 = vlaneseq
    %v38 = vshrl.u32 %v37, 7
    %v39 = vsub.s32 0, %v38
    %v40 = vrot.slane %v36, %v39
    %vm41 = vcmask 261120
    %v43 = vsel %vm41, %v18, 0
    %v46 = vsel %vm41, %v19, 0
    %48 = vmatprep.subr.mxu0 0.0
    %49 = vmatpush1.msra.mxu0 %v20
    %50 = vmatprep.subr.mxu0 0.0
    %51 = vmatpush1.msra.mxu0 %v22
    %52 = vmatprep.subr.mxu0 0.0
    %53 = vmatpush1.msra.mxu0 %v24
    %54 = vmatprep.subr.mxu0 0.0
    %55 = vmatpush1.msra.mxu0 %v26
    %56 = vmatprep.subr.mxu0 0.0
    %57 = vmatpush1.msra.mxu0 0.0
    %58 = vmatprep.subr.mxu0 0.0
    %59 = vmatpush1.msra.mxu0 0.0
    %60 = vmatprep.subr.mxu0 0.0
    %61 = vmatpush1.msra.mxu0 0.0
    %62 = vmatprep.subr.mxu0 0.0
    %63 = vmatpush1.msra.mxu0 0.0
    %64 = vmatprep.subr.mxu0 0.0
    %65 = vmatpush1.msra.mxu0 0.0
    %66 = vmatprep.subr.mxu0 0.0
    %67 = vmatpush1.msra.mxu0 0.0
    %68 = vmatprep.subr.mxu0 0.0
    %69 = vmatpush1.msra.mxu0 0.0
    %70 = vmatprep.subr.mxu0 0.0
    %71 = vmatpush1.msra.mxu0 0.0
    %72 = vmatprep.subr.mxu0 0.0
    %73 = vmatpush1.msra.mxu0 0.0
    %74 = vmatprep.subr.mxu0 0.0
    %75 = vmatpush1.msra.mxu0 0.0
    %76 = vmatprep.subr.mxu0 0.0
    %77 = vmatpush1.msra.mxu0 0.0
    %78 = vmatprep.subr.mxu0 0.0
    %79 = vmatpush1.msra.mxu0 0.0
    %80 = vmatprep.subr.mxu0 0.0
    %81 = vmatpush1.msra.mxu0 0.0
    %82 = vmatprep.subr.mxu0 0.0
    %83 = vmatpush1.msra.mxu0 0.0
    %84 = vmatprep.subr.mxu0 0.0
    %85 = vmatpush1.msra.mxu0 0.0
    %86 = vmatprep.subr.mxu0 0.0
    %87 = vmatpush1.msra.mxu0 0.0
    %88 = vmatprep.subr.mxu0 0.0
    %89 = vmatpush1.msra.mxu0 0.0
    %90 = vmatprep.subr.mxu0 0.0
    %91 = vmatpush1.msra.mxu0 0.0
    %92 = vmatprep.subr.mxu0 0.0
    %93 = vmatpush1.msra.mxu0 0.0
    %94 = vmatprep.subr.mxu0 0.0
    %95 = vmatpush1.msra.mxu0 0.0
    %96 = vmatprep.subr.mxu0 0.0
    %97 = vmatpush1.msra.mxu0 0.0
    %98 = vmatprep.subr.mxu0 0.0
    %99 = vmatpush1.msra.mxu0 0.0
    %100 = vmatprep.subr.mxu0 0.0
    %101 = vmatpush1.msra.mxu0 0.0
    %102 = vmatprep.subr.mxu0 0.0
    %103 = vmatpush1.msra.mxu0 0.0
    %104 = vmatprep.subr.mxu0 0.0
    %105 = vmatpush1.msra.mxu0 0.0
    %106 = vmatprep.subr.mxu0 0.0
    %107 = vmatpush1.msra.mxu0 0.0
    %108 = vmatprep.subr.mxu0 0.0
    %109 = vmatpush1.msra.mxu0 0.0
    %110 = vmatprep.subr.mxu0 0.0
    %111 = vmatpush1.msra.mxu0 0.0
    %112 = vmatprep.mubr.f32.mxu0 0.0
    %113 = vmatmul.mubr.f32.gmra.mrb[0].mxu0 %v43
    %v114 = vpop.f32.mrb[0].mxu0
    %v115 = vadd.f32 %v40, %v114
    %v116 = vpop.f32.mrb[0].mxu0
    %117 = vmatprep.mubr.f32.mxu0 0.0
    %118 = vmatmul.mubr.f32.gmra.mrb[0].mxu0 %v46
    %v119 = vpop.f32.mrb[0].mxu0
    %v120 = vadd.f32 %v40, %v119
    %v121 = vpop.f32.mrb[0].mxu0
    %122 = vdwg.mxu0
    %124 = vrot.lane.b32.xlu0 %v115, 96
    %v125 = vpop.permute.xlu0 %124
    %vm126 = vcmask 64512
    %v127 = vsel %vm126, %v115, 0
    %v129 = vsel %vm126, %v125, 0
    %131 = vmatprep.subr.mxu0 0.0
    %132 = vmatpush1.xpose.msra.mxu0 %v129
    %133 = vmatprep.subr.mxu0 0.0
    %134 = vmatpush1.xpose.msra.mxu0 0.0
    %135 = vmatprep.subr.mxu0 0.0
    %136 = vmatpush1.xpose.msra.mxu0 0.0
    %137 = vmatprep.subr.mxu0 0.0
    %138 = vmatpush1.xpose.msra.mxu0 0.0
    %139 = vmatprep.subr.mxu0 0.0
    %140 = vmatpush1.xpose.msra.mxu0 0.0
    %141 = vmatprep.subr.mxu0 0.0
    %142 = vmatpush1.xpose.msra.mxu0 0.0
    %143 = vmatprep.subr.mxu0 0.0
    %144 = vmatpush1.xpose.msra.mxu0 0.0
    %145 = vmatprep.subr.mxu0 0.0
    %146 = vmatpush1.xpose.msra.mxu0 0.0
    %147 = vmatprep.subr.mxu0 0.0
    %148 = vmatpush1.xpose.msra.mxu0 0.0
    %149 = vmatprep.subr.mxu0 0.0
    %150 = vmatpush1.xpose.msra.mxu0 0.0
    %151 = vmatprep.subr.mxu0 0.0
    %152 = vmatpush1.xpose.msra.mxu0 0.0
    %153 = vmatprep.subr.mxu0 0.0
    %154 = vmatpush1.xpose.msra.mxu0 0.0
    %155 = vmatprep.subr.mxu0 0.0
    %156 = vmatpush1.xpose.msra.mxu0 0.0
    %157 = vmatprep.subr.mxu0 0.0
    %158 = vmatpush1.xpose.msra.mxu0 0.0
    %159 = vmatprep.subr.mxu0 0.0
    %160 = vmatpush1.xpose.msra.mxu0 0.0
    %161 = vmatprep.subr.mxu0 0.0
    %162 = vmatpush1.xpose.msra.mxu0 0.0
    %163 = vmatprep.subr.mxu0 0.0
    %164 = vmatpush1.xpose.msra.mxu0 0.0
    %165 = vmatprep.subr.mxu0 0.0
    %166 = vmatpush1.xpose.msra.mxu0 0.0
    %167 = vmatprep.subr.mxu0 0.0
    %168 = vmatpush1.xpose.msra.mxu0 0.0
    %169 = vmatprep.subr.mxu0 0.0
    %170 = vmatpush1.xpose.msra.mxu0 0.0
    %171 = vmatprep.subr.mxu0 0.0
    %172 = vmatpush1.xpose.msra.mxu0 0.0
    %173 = vmatprep.subr.mxu0 0.0
    %174 = vmatpush1.xpose.msra.mxu0 0.0
    %175 = vmatprep.subr.mxu0 0.0
    %176 = vmatpush1.xpose.msra.mxu0 0.0
    %177 = vmatprep.subr.mxu0 0.0
    %178 = vmatpush1.xpose.msra.mxu0 0.0
    %179 = vmatprep.subr.mxu0 0.0
    %180 = vmatpush1.xpose.msra.mxu0 0.0
    %181 = vmatprep.subr.mxu0 0.0
    %182 = vmatpush1.xpose.msra.mxu0 0.0
    %183 = vmatprep.subr.mxu0 0.0
    %184 = vmatpush1.xpose.msra.mxu0 0.0
    %185 = vmatprep.subr.mxu0 0.0
    %186 = vmatpush1.xpose.msra.mxu0 0.0
    %187 = vmatprep.subr.mxu0 0.0
    %188 = vmatpush1.xpose.msra.mxu0 0.0
    %189 = vmatprep.subr.mxu0 0.0
    %190 = vmatpush1.xpose.msra.mxu0 0.0
    %191 = vmatprep.subr.mxu0 0.0
    %192 = vmatpush1.xpose.msra.mxu0 0.0
    %193 = vmatprep.subr.mxu0 0.0
    %194 = vmatpush1.xpose.msra.mxu0 0.0
    %195 = vmatprep.mubr.f32.mxu0 0.0
    %196 = vmatmul.mubr.f32.gmra.mrb[0].mxu0 %v127
    %v197 = vpop.f32.mrb[0].mxu0
    %v198 = vadd.f32 0.0, %v197
    %v199 = vpop.f32.mrb[0].mxu0
    %200 = vdwg.mxu0
    %202 = vrot.lane.b32.xlu0 %v120, 96
    %v203 = vpop.permute.xlu0 %202
    %v204 = vsel %vm126, %v120, 0
    %v206 = vsel %vm126, %v203, 0
    %208 = vmatprep.subr.mxu0 0.0
    %209 = vmatpush1.xpose.msra.mxu0 %v206
    %210 = vmatprep.subr.mxu0 0.0
    %211 = vmatpush1.xpose.msra.mxu0 0.0
    %212 = vmatprep.subr.mxu0 0.0
    %213 = vmatpush1.xpose.msra.mxu0 0.0
    %214 = vmatprep.subr.mxu0 0.0
    %215 = vmatpush1.xpose.msra.mxu0 0.0
    %216 = vmatprep.subr.mxu0 0.0
    %217 = vmatpush1.xpose.msra.mxu0 0.0
    %218 = vmatprep.subr.mxu0 0.0
    %219 = vmatpush1.xpose.msra.mxu0 0.0
    %220 = vmatprep.subr.mxu0 0.0
    %221 = vmatpush1.xpose.msra.mxu0 0.0
    %222 = vmatprep.subr.mxu0 0.0
    %223 = vmatpush1.xpose.msra.mxu0 0.0
    %224 = vmatprep.subr.mxu0 0.0
    %225 = vmatpush1.xpose.msra.mxu0 0.0
    %226 = vmatprep.subr.mxu0 0.0
    %227 = vmatpush1.xpose.msra.mxu0 0.0
    %228 = vmatprep.subr.mxu0 0.0
    %229 = vmatpush1.xpose.msra.mxu0 0.0
    %230 = vmatprep.subr.mxu0 0.0
    %231 = vmatpush1.xpose.msra.mxu0 0.0
    %232 = vmatprep.subr.mxu0 0.0
    %233 = vmatpush1.xpose.msra.mxu0 0.0
    %234 = vmatprep.subr.mxu0 0.0
    %235 = vmatpush1.xpose.msra.mxu0 0.0
    %236 = vmatprep.subr.mxu0 0.0
    %237 = vmatpush1.xpose.msra.mxu0 0.0
    %238 = vmatprep.subr.mxu0 0.0
    %239 = vmatpush1.xpose.msra.mxu0 0.0
    %240 = vmatprep.subr.mxu0 0.0
    %241 = vmatpush1.xpose.msra.mxu0 0.0
    %242 = vmatprep.subr.mxu0 0.0
    %243 = vmatpush1.xpose.msra.mxu0 0.0
    %244 = vmatprep.subr.mxu0 0.0
    %245 = vmatpush1.xpose.msra.mxu0 0.0
    %246 = vmatprep.subr.mxu0 0.0
    %247 = vmatpush1.xpose.msra.mxu0 0.0
    %248 = vmatprep.subr.mxu0 0.0
    %249 = vmatpush1.xpose.msra.mxu0 0.0
    %250 = vmatprep.subr.mxu0 0.0
    %251 = vmatpush1.xpose.msra.mxu0 0.0
    %252 = vmatprep.subr.mxu0 0.0
    %253 = vmatpush1.xpose.msra.mxu0 0.0
    %254 = vmatprep.subr.mxu0 0.0
    %255 = vmatpush1.xpose.msra.mxu0 0.0
    %256 = vmatprep.subr.mxu0 0.0
    %257 = vmatpush1.xpose.msra.mxu0 0.0
    %258 = vmatprep.subr.mxu0 0.0
    %259 = vmatpush1.xpose.msra.mxu0 0.0
    %260 = vmatprep.subr.mxu0 0.0
    %261 = vmatpush1.xpose.msra.mxu0 0.0
    %262 = vmatprep.subr.mxu0 0.0
    %263 = vmatpush1.xpose.msra.mxu0 0.0
    %264 = vmatprep.subr.mxu0 0.0
    %265 = vmatpush1.xpose.msra.mxu0 0.0
    %266 = vmatprep.subr.mxu0 0.0
    %267 = vmatpush1.xpose.msra.mxu0 0.0
    %268 = vmatprep.subr.mxu0 0.0
    %269 = vmatpush1.xpose.msra.mxu0 0.0
    %270 = vmatprep.subr.mxu0 0.0
    %271 = vmatpush1.xpose.msra.mxu0 0.0
    %272 = vmatprep.mubr.f32.mxu0 0.0
    %273 = vmatmul.mubr.f32.gmra.mrb[0].mxu0 %v204
    %v274 = vpop.f32.mrb[0].mxu0
    %v275 = vadd.f32 0.0, %v274
    %v276 = vpop.f32.mrb[0].mxu0
    %277 = vdwg.mxu0
    %v278 = vsel %vm126, %v198, -inf
    %279 = vmax.xlane.f32.xlu0 %v278
    %v280 = vpop.xlane.xlu0 %279
    %v281 = vsel %vm126, %v275, -inf
    %282 = vmax.xlane.f32.xlu0 %v281
    %v283 = vpop.xlane.xlu0 %282
    %v284 = vsub.f32 %v198, %v280
    %v285 = vsub.f32 %v275, %v283
    %v286 = vmul.f32 %v284, 1.442695
    %v287 = vpow.pop %v286
    %v288 = vmul.f32 %v285, 1.442695
    %v289 = vpow.pop %v288
    %v290 = vsel %vm126, %v287, 0.0
    %291 = vadd.xlane.f32.xlu0 %v290
    %v292 = vpop.xlane.xlu0 %291
    %v293 = vsel %vm126, %v289, 0.0
    %294 = vadd.xlane.f32.xlu0 %v293
    %v295 = vpop.xlane.xlu0 %294
    %v296 = vrcp.pop %v292
    %v297 = vrcp.pop %v295
    %v298 = vmul.f32 %v287, %v296
    %v299 = vmul.f32 %v289, %v297
    %300 = vrot.lane.b32.xlu0 %v115, 64
    %v301 = vpop.permute.xlu0 %300
    %v304 = vsel %vm126, %v298, 0
    %306 = vmatprep.subr.mxu0 0.0
    %307 = vmatpush1.msra.mxu0 %v301
    %308 = vmatprep.subr.mxu0 0.0
    %309 = vmatpush1.msra.mxu0 0.0
    %310 = vmatprep.subr.mxu0 0.0
    %311 = vmatpush1.msra.mxu0 0.0
    %312 = vmatprep.subr.mxu0 0.0
    %313 = vmatpush1.msra.mxu0 0.0
    %314 = vmatprep.subr.mxu0 0.0
    %315 = vmatpush1.msra.mxu0 0.0
    %316 = vmatprep.subr.mxu0 0.0
    %317 = vmatpush1.msra.mxu0 0.0
    %318 = vmatprep.subr.mxu0 0.0
    %319 = vmatpush1.msra.mxu0 0.0
    %320 = vmatprep.subr.mxu0 0.0
    %321 = vmatpush1.msra.mxu0 0.0
    %322 = vmatprep.subr.mxu0 0.0
    %323 = vmatpush1.msra.mxu0 0.0
    %324 = vmatprep.subr.mxu0 0.0
    %325 = vmatpush1.msra.mxu0 0.0
    %326 = vmatprep.subr.mxu0 0.0
    %327 = vmatpush1.msra.mxu0 0.0
    %328 = vmatprep.subr.mxu0 0.0
    %329 = vmatpush1.msra.mxu0 0.0
    %330 = vmatprep.subr.mxu0 0.0
    %331 = vmatpush1.msra.mxu0 0.0
    %332 = vmatprep.subr.mxu0 0.0
    %333 = vmatpush1.msra.mxu0 0.0
    %334 = vmatprep.subr.mxu0 0.0
    %335 = vmatpush1.msra.mxu0 0.0
    %336 = vmatprep.subr.mxu0 0.0
    %337 = vmatpush1.msra.mxu0 0.0
    %338 = vmatprep.subr.mxu0 0.0
    %339 = vmatpush1.msra.mxu0 0.0
    %340 = vmatprep.subr.mxu0 0.0
    %341 = vmatpush1.msra.mxu0 0.0
    %342 = vmatprep.subr.mxu0 0.0
    %343 = vmatpush1.msra.mxu0 0.0
    %344 = vmatprep.subr.mxu0 0.0
    %345 = vmatpush1.msra.mxu0 0.0
    %346 = vmatprep.subr.mxu0 0.0
    %347 = vmatpush1.msra.mxu0 0.0
    %348 = vmatprep.subr.mxu0 0.0
    %349 = vmatpush1.msra.mxu0 0.0
    %350 = vmatprep.subr.mxu0 0.0
    %351 = vmatpush1.msra.mxu0 0.0
    %352 = vmatprep.subr.mxu0 0.0
    %353 = vmatpush1.msra.mxu0 0.0
    %354 = vmatprep.subr.mxu0 0.0
    %355 = vmatpush1.msra.mxu0 0.0
    %356 = vmatprep.subr.mxu0 0.0
    %357 = vmatpush1.msra.mxu0 0.0
    %358 = vmatprep.subr.mxu0 0.0
    %359 = vmatpush1.msra.mxu0 0.0
    %360 = vmatprep.subr.mxu0 0.0
    %361 = vmatpush1.msra.mxu0 0.0
    %362 = vmatprep.subr.mxu0 0.0
    %363 = vmatpush1.msra.mxu0 0.0
    %364 = vmatprep.subr.mxu0 0.0
    %365 = vmatpush1.msra.mxu0 0.0
    %366 = vmatprep.subr.mxu0 0.0
    %367 = vmatpush1.msra.mxu0 0.0
    %368 = vmatprep.subr.mxu0 0.0
    %369 = vmatpush1.msra.mxu0 0.0
    %370 = vmatprep.mubr.f32.mxu0 0.0
    %371 = vmatmul.mubr.f32.gmra.mrb[0].mxu0 %v304
    %v372 = vpop.f32.mrb[0].mxu0
    %v373 = vadd.f32 0.0, %v372
    %v374 = vpop.f32.mrb[0].mxu0
    %375 = vdwg.mxu0
    %376 = vrot.lane.b32.xlu0 %v120, 64
    %v377 = vpop.permute.xlu0 %376
    %v380 = vsel %vm126, %v299, 0
    %382 = vmatprep.subr.mxu0 0.0
    %383 = vmatpush1.msra.mxu0 %v377
    %384 = vmatprep.subr.mxu0 0.0
    %385 = vmatpush1.msra.mxu0 0.0
    %386 = vmatprep.subr.mxu0 0.0
    %387 = vmatpush1.msra.mxu0 0.0
    %388 = vmatprep.subr.mxu0 0.0
    %389 = vmatpush1.msra.mxu0 0.0
    %390 = vmatprep.subr.mxu0 0.0
    %391 = vmatpush1.msra.mxu0 0.0
    %392 = vmatprep.subr.mxu0 0.0
    %393 = vmatpush1.msra.mxu0 0.0
    %394 = vmatprep.subr.mxu0 0.0
    %395 = vmatpush1.msra.mxu0 0.0
    %396 = vmatprep.subr.mxu0 0.0
    %397 = vmatpush1.msra.mxu0 0.0
    %398 = vmatprep.subr.mxu0 0.0
    %399 = vmatpush1.msra.mxu0 0.0
    %400 = vmatprep.subr.mxu0 0.0
    %401 = vmatpush1.msra.mxu0 0.0
    %402 = vmatprep.subr.mxu0 0.0
    %403 = vmatpush1.msra.mxu0 0.0
    %404 = vmatprep.subr.mxu0 0.0
    %405 = vmatpush1.msra.mxu0 0.0
    %406 = vmatprep.subr.mxu0 0.0
    %407 = vmatpush1.msra.mxu0 0.0
    %408 = vmatprep.subr.mxu0 0.0
    %409 = vmatpush1.msra.mxu0 0.0
    %410 = vmatprep.subr.mxu0 0.0
    %411 = vmatpush1.msra.mxu0 0.0
    %412 = vmatprep.subr.mxu0 0.0
    %413 = vmatpush1.msra.mxu0 0.0
    %414 = vmatprep.subr.mxu0 0.0
    %415 = vmatpush1.msra.mxu0 0.0
    %416 = vmatprep.subr.mxu0 0.0
    %417 = vmatpush1.msra.mxu0 0.0
    %418 = vmatprep.subr.mxu0 0.0
    %419 = vmatpush1.msra.mxu0 0.0
    %420 = vmatprep.subr.mxu0 0.0
    %421 = vmatpush1.msra.mxu0 0.0
    %422 = vmatprep.subr.mxu0 0.0
    %423 = vmatpush1.msra.mxu0 0.0
    %424 = vmatprep.subr.mxu0 0.0
    %425 = vmatpush1.msra.mxu0 0.0
    %426 = vmatprep.subr.mxu0 0.0
    %427 = vmatpush1.msra.mxu0 0.0
    %428 = vmatprep.subr.mxu0 0.0
    %429 = vmatpush1.msra.mxu0 0.0
    %430 = vmatprep.subr.mxu0 0.0
    %431 = vmatpush1.msra.mxu0 0.0
    %432 = vmatprep.subr.mxu0 0.0
    %433 = vmatpush1.msra.mxu0 0.0
    %434 = vmatprep.subr.mxu0 0.0
    %435 = vmatpush1.msra.mxu0 0.0
    %436 = vmatprep.subr.mxu0 0.0
    %437 = vmatpush1.msra.mxu0 0.0
    %438 = vmatprep.subr.mxu0 0.0
    %439 = vmatpush1.msra.mxu0 0.0
    %440 = vmatprep.subr.mxu0 0.0
    %441 = vmatpush1.msra.mxu0 0.0
    %442 = vmatprep.subr.mxu0 0.0
    %443 = vmatpush1.msra.mxu0 0.0
    %444 = vmatprep.subr.mxu0 0.0
    %445 = vmatpush1.msra.mxu0 0.0
    %446 = vmatprep.mubr.f32.mxu0 0.0
    %447 = vmatmul.mubr.f32.gmra.mrb[0].mxu0 %v380
    %v448 = vpop.f32.mrb[0].mxu0
    %v449 = vadd.f32 0.0, %v448
    %v450 = vpop.f32.mrb[0].mxu0
    %451 = vdwg.mxu0
    %452 = vst.msk [vmem:[#allocation2] sm:$0xff] %vm126, %v373
    %453 = vst.msk [vmem:[#allocation2 + $0x8] sm:$0xff] %vm126, %v449
    %454 = vrot.lane.b32.xlu0 %v115, 120
    %v455 = vpop.permute.xlu0 %454
    %456 = vrot.lane.b32.xlu0 %v115, 88
    %v457 = vpop.permute.xlu0 %456
    %v458 = vsel %vm126, %v455, 0
    %v460 = vsel %vm126, %v457, 0
    %462 = vmatprep.subr.mxu0 0.0
    %463 = vmatpush1.xpose.msra.mxu0 %v460
    %464 = vmatprep.subr.mxu0 0.0
    %465 = vmatpush1.xpose.msra.mxu0 0.0
    %466 = vmatprep.subr.mxu0 0.0
    %467 = vmatpush1.xpose.msra.mxu0 0.0
    %468 = vmatprep.subr.mxu0 0.0
    %469 = vmatpush1.xpose.msra.mxu0 0.0
    %470 = vmatprep.subr.mxu0 0.0
    %471 = vmatpush1.xpose.msra.mxu0 0.0
    %472 = vmatprep.subr.mxu0 0.0
    %473 = vmatpush1.xpose.msra.mxu0 0.0
    %474 = vmatprep.subr.mxu0 0.0
    %475 = vmatpush1.xpose.msra.mxu0 0.0
    %476 = vmatprep.subr.mxu0 0.0
    %477 = vmatpush1.xpose.msra.mxu0 0.0
    %478 = vmatprep.subr.mxu0 0.0
    %479 = vmatpush1.xpose.msra.mxu0 0.0
    %480 = vmatprep.subr.mxu0 0.0
    %481 = vmatpush1.xpose.msra.mxu0 0.0
    %482 = vmatprep.subr.mxu0 0.0
    %483 = vmatpush1.xpose.msra.mxu0 0.0
    %484 = vmatprep.subr.mxu0 0.0
    %485 = vmatpush1.xpose.msra.mxu0 0.0
    %486 = vmatprep.subr.mxu0 0.0
    %487 = vmatpush1.xpose.msra.mxu0 0.0
    %488 = vmatprep.subr.mxu0 0.0
    %489 = vmatpush1.xpose.msra.mxu0 0.0
    %490 = vmatprep.subr.mxu0 0.0
    %491 = vmatpush1.xpose.msra.mxu0 0.0
    %492 = vmatprep.subr.mxu0 0.0
    %493 = vmatpush1.xpose.msra.mxu0 0.0
    %494 = vmatprep.subr.mxu0 0.0
    %495 = vmatpush1.xpose.msra.mxu0 0.0
    %496 = vmatprep.subr.mxu0 0.0
    %497 = vmatpush1.xpose.msra.mxu0 0.0
    %498 = vmatprep.subr.mxu0 0.0
    %499 = vmatpush1.xpose.msra.mxu0 0.0
    %500 = vmatprep.subr.mxu0 0.0
    %501 = vmatpush1.xpose.msra.mxu0 0.0
    %502 = vmatprep.subr.mxu0 0.0
    %503 = vmatpush1.xpose.msra.mxu0 0.0
    %504 = vmatprep.subr.mxu0 0.0
    %505 = vmatpush1.xpose.msra.mxu0 0.0
    %506 = vmatprep.subr.mxu0 0.0
    %507 = vmatpush1.xpose.msra.mxu0 0.0
    %508 = vmatprep.subr.mxu0 0.0
    %509 = vmatpush1.xpose.msra.mxu0 0.0
    %510 = vmatprep.subr.mxu0 0.0
    %511 = vmatpush1.xpose.msra.mxu0 0.0
    %512 = vmatprep.subr.mxu0 0.0
    %513 = vmatpush1.xpose.msra.mxu0 0.0
    %514 = vmatprep.subr.mxu0 0.0
    %515 = vmatpush1.xpose.msra.mxu0 0.0
    %516 = vmatprep.subr.mxu0 0.0
    %517 = vmatpush1.xpose.msra.mxu0 0.0
    %518 = vmatprep.subr.mxu0 0.0
    %519 = vmatpush1.xpose.msra.mxu0 0.0
    %520 = vmatprep.subr.mxu0 0.0
    %521 = vmatpush1.xpose.msra.mxu0 0.0
    %522 = vmatprep.subr.mxu0 0.0
    %523 = vmatpush1.xpose.msra.mxu0 0.0
    %524 = vmatprep.subr.mxu0 0.0
    %525 = vmatpush1.xpose.msra.mxu0 0.0
    %526 = vmatprep.mubr.f32.mxu0 0.0
    %527 = vmatmul.mubr.f32.gmra.mrb[0].mxu0 %v458
    %v528 = vpop.f32.mrb[0].mxu0
    %v529 = vadd.f32 0.0, %v528
    %v530 = vpop.f32.mrb[0].mxu0
    %531 = vdwg.mxu0
    %532 = vrot.lane.b32.xlu0 %v120, 120
    %v533 = vpop.permute.xlu0 %532
    %534 = vrot.lane.b32.xlu0 %v120, 88
    %v535 = vpop.permute.xlu0 %534
    %v536 = vsel %vm126, %v533, 0
    %v538 = vsel %vm126, %v535, 0
    %540 = vmatprep.subr.mxu0 0.0
    %541 = vmatpush1.xpose.msra.mxu0 %v538
    %542 = vmatprep.subr.mxu0 0.0
    %543 = vmatpush1.xpose.msra.mxu0 0.0
    %544 = vmatprep.subr.mxu0 0.0
    %545 = vmatpush1.xpose.msra.mxu0 0.0
    %546 = vmatprep.subr.mxu0 0.0
    %547 = vmatpush1.xpose.msra.mxu0 0.0
    %548 = vmatprep.subr.mxu0 0.0
    %549 = vmatpush1.xpose.msra.mxu0 0.0
    %550 = vmatprep.subr.mxu0 0.0
    %551 = vmatpush1.xpose.msra.mxu0 0.0
    %552 = vmatprep.subr.mxu0 0.0
    %553 = vmatpush1.xpose.msra.mxu0 0.0
    %554 = vmatprep.subr.mxu0 0.0
    %555 = vmatpush1.xpose.msra.mxu0 0.0
    %556 = vmatprep.subr.mxu0 0.0
    %557 = vmatpush1.xpose.msra.mxu0 0.0
    %558 = vmatprep.subr.mxu0 0.0
    %559 = vmatpush1.xpose.msra.mxu0 0.0
    %560 = vmatprep.subr.mxu0 0.0
    %561 = vmatpush1.xpose.msra.mxu0 0.0
    %562 = vmatprep.subr.mxu0 0.0
    %563 = vmatpush1.xpose.msra.mxu0 0.0
    %564 = vmatprep.subr.mxu0 0.0
    %565 = vmatpush1.xpose.msra.mxu0 0.0
    %566 = vmatprep.subr.mxu0 0.0
    %567 = vmatpush1.xpose.msra.mxu0 0.0
    %568 = vmatprep.subr.mxu0 0.0
    %569 = vmatpush1.xpose.msra.mxu0 0.0
    %570 = vmatprep.subr.mxu0 0.0
    %571 = vmatpush1.xpose.msra.mxu0 0.0
    %572 = vmatprep.subr.mxu0 0.0
    %573 = vmatpush1.xpose.msra.mxu0 0.0
    %574 = vmatprep.subr.mxu0 0.0
    %575 = vmatpush1.xpose.msra.mxu0 0.0
    %576 = vmatprep.subr.mxu0 0.0
    %577 = vmatpush1.xpose.msra.mxu0 0.0
    %578 = vmatprep.subr.mxu0 0.0
    %579 = vmatpush1.xpose.msra.mxu0 0.0
    %580 = vmatprep.subr.mxu0 0.0
    %581 = vmatpush1.xpose.msra.mxu0 0.0
    %582 = vmatprep.subr.mxu0 0.0
    %583 = vmatpush1.xpose.msra.mxu0 0.0
    %584 = vmatprep.subr.mxu0 0.0
    %585 = vmatpush1.xpose.msra.mxu0 0.0
    %586 = vmatprep.subr.mxu0 0.0
    %587 = vmatpush1.xpose.msra.mxu0 0.0
    %588 = vmatprep.subr.mxu0 0.0
    %589 = vmatpush1.xpose.msra.mxu0 0.0
    %590 = vmatprep.subr.mxu0 0.0
    %591 = vmatpush1.xpose.msra.mxu0 0.0
    %592 = vmatprep.subr.mxu0 0.0
    %593 = vmatpush1.xpose.msra.mxu0 0.0
    %594 = vmatprep.subr.mxu0 0.0
    %595 = vmatpush1.xpose.msra.mxu0 0.0
    %596 = vmatprep.subr.mxu0 0.0
    %597 = vmatpush1.xpose.msra.mxu0 0.0
    %598 = vmatprep.subr.mxu0 0.0
    %599 = vmatpush1.xpose.msra.mxu0 0.0
    %600 = vmatprep.subr.mxu0 0.0
    %601 = vmatpush1.xpose.msra.mxu0 0.0
    %602 = vmatprep.subr.mxu0 0.0
    %603 = vmatpush1.xpose.msra.mxu0 0.0
    %604 = vmatprep.mubr.f32.mxu0 0.0
    %605 = vmatmul.mubr.f32.gmra.mrb[0].mxu0 %v536
    %v606 = vpop.f32.mrb[0].mxu0
    %v607 = vadd.f32 0.0, %v606
    %v608 = vpop.f32.mrb[0].mxu0
    %609 = vdwg.mxu0
    %v610 = vsel %vm126, %v529, -inf
    %611 = vmax.xlane.f32.xlu0 %v610
    %v612 = vpop.xlane.xlu0 %611
    %v613 = vsel %vm126, %v607, -inf
    %614 = vmax.xlane.f32.xlu0 %v613
    %v615 = vpop.xlane.xlu0 %614
    %v616 = vsub.f32 %v529, %v612
    %v617 = vsub.f32 %v607, %v615
    %v618 = vmul.f32 %v616, 1.442695
    %v619 = vpow.pop %v618
    %v620 = vmul.f32 %v617, 1.442695
    %v621 = vpow.pop %v620
    %v622 = vsel %vm126, %v619, 0.0
    %623 = vadd.xlane.f32.xlu0 %v622
    %v624 = vpop.xlane.xlu0 %623
    %v625 = vsel %vm126, %v621, 0.0
    %626 = vadd.xlane.f32.xlu0 %v625
    %v627 = vpop.xlane.xlu0 %626
    %v628 = vrcp.pop %v624
    %v629 = vrcp.pop %v627
    %v630 = vmul.f32 %v619, %v628
    %v631 = vmul.f32 %v621, %v629
    %632 = vrot.lane.b32.xlu0 %v115, 56
    %v633 = vpop.permute.xlu0 %632
    %v636 = vsel %vm126, %v630, 0
    %638 = vmatprep.subr.mxu0 0.0
    %639 = vmatpush1.msra.mxu0 %v633
    %640 = vmatprep.subr.mxu0 0.0
    %641 = vmatpush1.msra.mxu0 0.0
    %642 = vmatprep.subr.mxu0 0.0
    %643 = vmatpush1.msra.mxu0 0.0
    %644 = vmatprep.subr.mxu0 0.0
    %645 = vmatpush1.msra.mxu0 0.0
    %646 = vmatprep.subr.mxu0 0.0
    %647 = vmatpush1.msra.mxu0 0.0
    %648 = vmatprep.subr.mxu0 0.0
    %649 = vmatpush1.msra.mxu0 0.0
    %650 = vmatprep.subr.mxu0 0.0
    %651 = vmatpush1.msra.mxu0 0.0
    %652 = vmatprep.subr.mxu0 0.0
    %653 = vmatpush1.msra.mxu0 0.0
    %654 = vmatprep.subr.mxu0 0.0
    %655 = vmatpush1.msra.mxu0 0.0
    %656 = vmatprep.subr.mxu0 0.0
    %657 = vmatpush1.msra.mxu0 0.0
    %658 = vmatprep.subr.mxu0 0.0
    %659 = vmatpush1.msra.mxu0 0.0
    %660 = vmatprep.subr.mxu0 0.0
    %661 = vmatpush1.msra.mxu0 0.0
    %662 = vmatprep.subr.mxu0 0.0
    %663 = vmatpush1.msra.mxu0 0.0
    %664 = vmatprep.subr.mxu0 0.0
    %665 = vmatpush1.msra.mxu0 0.0
    %666 = vmatprep.subr.mxu0 0.0
    %667 = vmatpush1.msra.mxu0 0.0
    %668 = vmatprep.subr.mxu0 0.0
    %669 = vmatpush1.msra.mxu0 0.0
    %670 = vmatprep.subr.mxu0 0.0
    %671 = vmatpush1.msra.mxu0 0.0
    %672 = vmatprep.subr.mxu0 0.0
    %673 = vmatpush1.msra.mxu0 0.0
    %674 = vmatprep.subr.mxu0 0.0
    %675 = vmatpush1.msra.mxu0 0.0
    %676 = vmatprep.subr.mxu0 0.0
    %677 = vmatpush1.msra.mxu0 0.0
    %678 = vmatprep.subr.mxu0 0.0
    %679 = vmatpush1.msra.mxu0 0.0
    %680 = vmatprep.subr.mxu0 0.0
    %681 = vmatpush1.msra.mxu0 0.0
    %682 = vmatprep.subr.mxu0 0.0
    %683 = vmatpush1.msra.mxu0 0.0
    %684 = vmatprep.subr.mxu0 0.0
    %685 = vmatpush1.msra.mxu0 0.0
    %686 = vmatprep.subr.mxu0 0.0
    %687 = vmatpush1.msra.mxu0 0.0
    %688 = vmatprep.subr.mxu0 0.0
    %689 = vmatpush1.msra.mxu0 0.0
    %690 = vmatprep.subr.mxu0 0.0
    %691 = vmatpush1.msra.mxu0 0.0
    %692 = vmatprep.subr.mxu0 0.0
    %693 = vmatpush1.msra.mxu0 0.0
    %694 = vmatprep.subr.mxu0 0.0
    %695 = vmatpush1.msra.mxu0 0.0
    %696 = vmatprep.subr.mxu0 0.0
    %697 = vmatpush1.msra.mxu0 0.0
    %698 = vmatprep.subr.mxu0 0.0
    %699 = vmatpush1.msra.mxu0 0.0
    %700 = vmatprep.subr.mxu0 0.0
    %701 = vmatpush1.msra.mxu0 0.0
    %702 = vmatprep.mubr.f32.mxu0 0.0
    %703 = vmatmul.mubr.f32.gmra.mrb[0].mxu0 %v636
    %v704 = vpop.f32.mrb[0].mxu0
    %v705 = vadd.f32 0.0, %v704
    %v706 = vpop.f32.mrb[0].mxu0
    %707 = vdwg.mxu0
    %708 = vrot.lane.b32.xlu0 %v120, 56
    %v709 = vpop.permute.xlu0 %708
    %v712 = vsel %vm126, %v631, 0
    %714 = vmatprep.subr.mxu0 0.0
    %715 = vmatpush1.msra.mxu0 %v709
    %716 = vmatprep.subr.mxu0 0.0
    %717 = vmatpush1.msra.mxu0 0.0
    %718 = vmatprep.subr.mxu0 0.0
    %719 = vmatpush1.msra.mxu0 0.0
    %720 = vmatprep.subr.mxu0 0.0
    %721 = vmatpush1.msra.mxu0 0.0
    %722 = vmatprep.subr.mxu0 0.0
    %723 = vmatpush1.msra.mxu0 0.0
    %724 = vmatprep.subr.mxu0 0.0
    %725 = vmatpush1.msra.mxu0 0.0
    %726 = vmatprep.subr.mxu0 0.0
    %727 = vmatpush1.msra.mxu0 0.0
    %728 = vmatprep.subr.mxu0 0.0
    %729 = vmatpush1.msra.mxu0 0.0
    %730 = vmatprep.subr.mxu0 0.0
    %731 = vmatpush1.msra.mxu0 0.0
    %732 = vmatprep.subr.mxu0 0.0
    %733 = vmatpush1.msra.mxu0 0.0
    %734 = vmatprep.subr.mxu0 0.0
    %735 = vmatpush1.msra.mxu0 0.0
    %736 = vmatprep.subr.mxu0 0.0
    %737 = vmatpush1.msra.mxu0 0.0
    %738 = vmatprep.subr.mxu0 0.0
    %739 = vmatpush1.msra.mxu0 0.0
    %740 = vmatprep.subr.mxu0 0.0
    %741 = vmatpush1.msra.mxu0 0.0
    %742 = vmatprep.subr.mxu0 0.0
    %743 = vmatpush1.msra.mxu0 0.0
    %744 = vmatprep.subr.mxu0 0.0
    %745 = vmatpush1.msra.mxu0 0.0
    %746 = vmatprep.subr.mxu0 0.0
    %747 = vmatpush1.msra.mxu0 0.0
    %748 = vmatprep.subr.mxu0 0.0
    %749 = vmatpush1.msra.mxu0 0.0
    %750 = vmatprep.subr.mxu0 0.0
    %751 = vmatpush1.msra.mxu0 0.0
    %752 = vmatprep.subr.mxu0 0.0
    %753 = vmatpush1.msra.mxu0 0.0
    %754 = vmatprep.subr.mxu0 0.0
    %755 = vmatpush1.msra.mxu0 0.0
    %756 = vmatprep.subr.mxu0 0.0
    %757 = vmatpush1.msra.mxu0 0.0
    %758 = vmatprep.subr.mxu0 0.0
    %759 = vmatpush1.msra.mxu0 0.0
    %760 = vmatprep.subr.mxu0 0.0
    %761 = vmatpush1.msra.mxu0 0.0
    %762 = vmatprep.subr.mxu0 0.0
    %763 = vmatpush1.msra.mxu0 0.0
    %764 = vmatprep.subr.mxu0 0.0
    %765 = vmatpush1.msra.mxu0 0.0
    %766 = vmatprep.subr.mxu0 0.0
    %767 = vmatpush1.msra.mxu0 0.0
    %768 = vmatprep.subr.mxu0 0.0
    %769 = vmatpush1.msra.mxu0 0.0
    %770 = vmatprep.subr.mxu0 0.0
    %771 = vmatpush1.msra.mxu0 0.0
    %772 = vmatprep.subr.mxu0 0.0
    %773 = vmatpush1.msra.mxu0 0.0
    %774 = vmatprep.subr.mxu0 0.0
    %775 = vmatpush1.msra.mxu0 0.0
    %776 = vmatprep.subr.mxu0 0.0
    %777 = vmatpush1.msra.mxu0 0.0
    %778 = vmatprep.mubr.f32.mxu0 0.0
    %779 = vmatmul.mubr.f32.gmra.mrb[0].mxu0 %v712
    %v780 = vpop.f32.mrb[0].mxu0
    %v781 = vadd.f32 0.0, %v780
    %v782 = vpop.f32.mrb[0].mxu0
    %783 = vdwg.mxu0
    %786 = vrot.lane.b32.xlu0 %v705, 8
    %v787 = vpop.permute.xlu0 %786
    %788 = vrot.lane.b32.xlu0 %v781, 8
    %v789 = vpop.permute.xlu0 %788
    %vm792 = vcmask 130112
    %793 = vst.msk [vmem:[#allocation2] sm:$0xff] %vm792, %v787
    %794 = vst.msk [vmem:[#allocation2 + $0x8] sm:$0xff] %vm792, %v789
    %795 = vrot.lane.b32.xlu0 %v115, 112
    %v796 = vpop.permute.xlu0 %795
    %797 = vrot.lane.b32.xlu0 %v115, 80
    %v798 = vpop.permute.xlu0 %797
    %v799 = vsel %vm126, %v796, 0
    %v801 = vsel %vm126, %v798, 0
    %803 = vmatprep.subr.mxu0 0.0
    %804 = vmatpush1.xpose.msra.mxu0 %v801
    %805 = vmatprep.subr.mxu0 0.0
    %806 = vmatpush1.xpose.msra.mxu0 0.0
    %807 = vmatprep.subr.mxu0 0.0
    %808 = vmatpush1.xpose.msra.mxu0 0.0
    %809 = vmatprep.subr.mxu0 0.0
    %810 = vmatpush1.xpose.msra.mxu0 0.0
    %811 = vmatprep.subr.mxu0 0.0
    %812 = vmatpush1.xpose.msra.mxu0 0.0
    %813 = vmatprep.subr.mxu0 0.0
    %814 = vmatpush1.xpose.msra.mxu0 0.0
    %815 = vmatprep.subr.mxu0 0.0
    %816 = vmatpush1.xpose.msra.mxu0 0.0
    %817 = vmatprep.subr.mxu0 0.0
    %818 = vmatpush1.xpose.msra.mxu0 0.0
    %819 = vmatprep.subr.mxu0 0.0
    %820 = vmatpush1.xpose.msra.mxu0 0.0
    %821 = vmatprep.subr.mxu0 0.0
    %822 = vmatpush1.xpose.msra.mxu0 0.0
    %823 = vmatprep.subr.mxu0 0.0
    %824 = vmatpush1.xpose.msra.mxu0 0.0
    %825 = vmatprep.subr.mxu0 0.0
    %826 = vmatpush1.xpose.msra.mxu0 0.0
    %827 = vmatprep.subr.mxu0 0.0
    %828 = vmatpush1.xpose.msra.mxu0 0.0
    %829 = vmatprep.subr.mxu0 0.0
    %830 = vmatpush1.xpose.msra.mxu0 0.0
    %831 = vmatprep.subr.mxu0 0.0
    %832 = vmatpush1.xpose.msra.mxu0 0.0
    %833 = vmatprep.subr.mxu0 0.0
    %834 = vmatpush1.xpose.msra.mxu0 0.0
    %835 = vmatprep.subr.mxu0 0.0
    %836 = vmatpush1.xpose.msra.mxu0 0.0
    %837 = vmatprep.subr.mxu0 0.0
    %838 = vmatpush1.xpose.msra.mxu0 0.0
    %839 = vmatprep.subr.mxu0 0.0
    %840 = vmatpush1.xpose.msra.mxu0 0.0
    %841 = vmatprep.subr.mxu0 0.0
    %842 = vmatpush1.xpose.msra.mxu0 0.0
    %843 = vmatprep.subr.mxu0 0.0
    %844 = vmatpush1.xpose.msra.mxu0 0.0
    %845 = vmatprep.subr.mxu0 0.0
    %846 = vmatpush1.xpose.msra.mxu0 0.0
    %847 = vmatprep.subr.mxu0 0.0
    %848 = vmatpush1.xpose.msra.mxu0 0.0
    %849 = vmatprep.subr.mxu0 0.0
    %850 = vmatpush1.xpose.msra.mxu0 0.0
    %851 = vmatprep.subr.mxu0 0.0
    %852 = vmatpush1.xpose.msra.mxu0 0.0
    %853 = vmatprep.subr.mxu0 0.0
    %854 = vmatpush1.xpose.msra.mxu0 0.0
    %855 = vmatprep.subr.mxu0 0.0
    %856 = vmatpush1.xpose.msra.mxu0 0.0
    %857 = vmatprep.subr.mxu0 0.0
    %858 = vmatpush1.xpose.msra.mxu0 0.0
    %859 = vmatprep.subr.mxu0 0.0
    %860 = vmatpush1.xpose.msra.mxu0 0.0
    %861 = vmatprep.subr.mxu0 0.0
    %862 = vmatpush1.xpose.msra.mxu0 0.0
    %863 = vmatprep.subr.mxu0 0.0
    %864 = vmatpush1.xpose.msra.mxu0 0.0
    %865 = vmatprep.subr.mxu0 0.0
    %866 = vmatpush1.xpose.msra.mxu0 0.0
    %867 = vmatprep.mubr.f32.mxu0 0.0
    %868 = vmatmul.mubr.f32.gmra.mrb[0].mxu0 %v799
    %v869 = vpop.f32.mrb[0].mxu0
    %v870 = vadd.f32 0.0, %v869
    %v871 = vpop.f32.mrb[0].mxu0
    %872 = vdwg.mxu0
    %873 = vrot.lane.b32.xlu0 %v120, 112
    %v874 = vpop.permute.xlu0 %873
    %875 = vrot.lane.b32.xlu0 %v120, 80
    %v876 = vpop.permute.xlu0 %875
    %v877 = vsel %vm126, %v874, 0
    %v879 = vsel %vm126, %v876, 0
    %881 = vmatprep.subr.mxu0 0.0
    %882 = vmatpush1.xpose.msra.mxu0 %v879
    %883 = vmatprep.subr.mxu0 0.0
    %884 = vmatpush1.xpose.msra.mxu0 0.0
    %885 = vmatprep.subr.mxu0 0.0
    %886 = vmatpush1.xpose.msra.mxu0 0.0
    %887 = vmatprep.subr.mxu0 0.0
    %888 = vmatpush1.xpose.msra.mxu0 0.0
    %889 = vmatprep.subr.mxu0 0.0
    %890 = vmatpush1.xpose.msra.mxu0 0.0
    %891 = vmatprep.subr.mxu0 0.0
    %892 = vmatpush1.xpose.msra.mxu0 0.0
    %893 = vmatprep.subr.mxu0 0.0
    %894 = vmatpush1.xpose.msra.mxu0 0.0
    %895 = vmatprep.subr.mxu0 0.0
    %896 = vmatpush1.xpose.msra.mxu0 0.0
    %897 = vmatprep.subr.mxu0 0.0
    %898 = vmatpush1.xpose.msra.mxu0 0.0
    %899 = vmatprep.subr.mxu0 0.0
    %900 = vmatpush1.xpose.msra.mxu0 0.0
    %901 = vmatprep.subr.mxu0 0.0
    %902 = vmatpush1.xpose.msra.mxu0 0.0
    %903 = vmatprep.subr.mxu0 0.0
    %904 = vmatpush1.xpose.msra.mxu0 0.0
    %905 = vmatprep.subr.mxu0 0.0
    %906 = vmatpush1.xpose.msra.mxu0 0.0
    %907 = vmatprep.subr.mxu0 0.0
    %908 = vmatpush1.xpose.msra.mxu0 0.0
    %909 = vmatprep.subr.mxu0 0.0
    %910 = vmatpush1.xpose.msra.mxu0 0.0
    %911 = vmatprep.subr.mxu0 0.0
    %912 = vmatpush1.xpose.msra.mxu0 0.0
    %913 = vmatprep.subr.mxu0 0.0
    %914 = vmatpush1.xpose.msra.mxu0 0.0
    %915 = vmatprep.subr.mxu0 0.0
    %916 = vmatpush1.xpose.msra.mxu0 0.0
    %917 = vmatprep.subr.mxu0 0.0
    %918 = vmatpush1.xpose.msra.mxu0 0.0
    %919 = vmatprep.subr.mxu0 0.0
    %920 = vmatpush1.xpose.msra.mxu0 0.0
    %921 = vmatprep.subr.mxu0 0.0
    %922 = vmatpush1.xpose.msra.mxu0 0.0
    %923 = vmatprep.subr.mxu0 0.0
    %924 = vmatpush1.xpose.msra.mxu0 0.0
    %925 = vmatprep.subr.mxu0 0.0
    %926 = vmatpush1.xpose.msra.mxu0 0.0
    %927 = vmatprep.subr.mxu0 0.0
    %928 = vmatpush1.xpose.msra.mxu0 0.0
    %929 = vmatprep.subr.mxu0 0.0
    %930 = vmatpush1.xpose.msra.mxu0 0.0
    %931 = vmatprep.subr.mxu0 0.0
    %932 = vmatpush1.xpose.msra.mxu0 0.0
    %933 = vmatprep.subr.mxu0 0.0
    %934 = vmatpush1.xpose.msra.mxu0 0.0
    %935 = vmatprep.subr.mxu0 0.0
    %936 = vmatpush1.xpose.msra.mxu0 0.0
    %937 = vmatprep.subr.mxu0 0.0
    %938 = vmatpush1.xpose.msra.mxu0 0.0
    %939 = vmatprep.subr.mxu0 0.0
    %940 = vmatpush1.xpose.msra.mxu0 0.0
    %941 = vmatprep.subr.mxu0 0.0
    %942 = vmatpush1.xpose.msra.mxu0 0.0
    %943 = vmatprep.subr.mxu0 0.0
    %944 = vmatpush1.xpose.msra.mxu0 0.0
    %945 = vmatprep.mubr.f32.mxu0 0.0
    %946 = vmatmul.mubr.f32.gmra.mrb[0].mxu0 %v877
    %v947 = vpop.f32.mrb[0].mxu0
    %v948 = vadd.f32 0.0, %v947
    %v949 = vpop.f32.mrb[0].mxu0
    %950 = vdwg.mxu0
    %v951 = vsel %vm126, %v870, -inf
    %952 = vmax.xlane.f32.xlu0 %v951
    %v953 = vpop.xlane.xlu0 %952
    %v954 = vsel %vm126, %v948, -inf
    %955 = vmax.xlane.f32.xlu0 %v954
    %v956 = vpop.xlane.xlu0 %955
    %v957 = vsub.f32 %v870, %v953
    %v958 = vsub.f32 %v948, %v956
    %v959 = vmul.f32 %v957, 1.442695
    %v960 = vpow.pop %v959
    %v961 = vmul.f32 %v958, 1.442695
    %v962 = vpow.pop %v961
    %v963 = vsel %vm126, %v960, 0.0
    %964 = vadd.xlane.f32.xlu0 %v963
    %v965 = vpop.xlane.xlu0 %964
    %v966 = vsel %vm126, %v962, 0.0
    %967 = vadd.xlane.f32.xlu0 %v966
    %v968 = vpop.xlane.xlu0 %967
    %v969 = vrcp.pop %v965
    %v970 = vrcp.pop %v968
    %v971 = vmul.f32 %v960, %v969
    %v972 = vmul.f32 %v962, %v970
    %973 = vrot.lane.b32.xlu0 %v115, 48
    %v974 = vpop.permute.xlu0 %973
    %v977 = vsel %vm126, %v971, 0
    %979 = vmatprep.subr.mxu0 0.0
    %980 = vmatpush1.msra.mxu0 %v974
    %981 = vmatprep.subr.mxu0 0.0
    %982 = vmatpush1.msra.mxu0 0.0
    %983 = vmatprep.subr.mxu0 0.0
    %984 = vmatpush1.msra.mxu0 0.0
    %985 = vmatprep.subr.mxu0 0.0
    %986 = vmatpush1.msra.mxu0 0.0
    %987 = vmatprep.subr.mxu0 0.0
    %988 = vmatpush1.msra.mxu0 0.0
    %989 = vmatprep.subr.mxu0 0.0
    %990 = vmatpush1.msra.mxu0 0.0
    %991 = vmatprep.subr.mxu0 0.0
    %992 = vmatpush1.msra.mxu0 0.0
    %993 = vmatprep.subr.mxu0 0.0
    %994 = vmatpush1.msra.mxu0 0.0
    %995 = vmatprep.subr.mxu0 0.0
    %996 = vmatpush1.msra.mxu0 0.0
    %997 = vmatprep.subr.mxu0 0.0
    %998 = vmatpush1.msra.mxu0 0.0
    %999 = vmatprep.subr.mxu0 0.0
    %1000 = vmatpush1.msra.mxu0 0.0
    %1001 = vmatprep.subr.mxu0 0.0
    %1002 = vmatpush1.msra.mxu0 0.0
    %1003 = vmatprep.subr.mxu0 0.0
    %1004 = vmatpush1.msra.mxu0 0.0
    %1005 = vmatprep.subr.mxu0 0.0
    %1006 = vmatpush1.msra.mxu0 0.0
    %1007 = vmatprep.subr.mxu0 0.0
    %1008 = vmatpush1.msra.mxu0 0.0
    %1009 = vmatprep.subr.mxu0 0.0
    %1010 = vmatpush1.msra.mxu0 0.0
    %1011 = vmatprep.subr.mxu0 0.0
    %1012 = vmatpush1.msra.mxu0 0.0
    %1013 = vmatprep.subr.mxu0 0.0
    %1014 = vmatpush1.msra.mxu0 0.0
    %1015 = vmatprep.subr.mxu0 0.0
    %1016 = vmatpush1.msra.mxu0 0.0
    %1017 = vmatprep.subr.mxu0 0.0
    %1018 = vmatpush1.msra.mxu0 0.0
    %1019 = vmatprep.subr.mxu0 0.0
    %1020 = vmatpush1.msra.mxu0 0.0
    %1021 = vmatprep.subr.mxu0 0.0
    %1022 = vmatpush1.msra.mxu0 0.0
    %1023 = vmatprep.subr.mxu0 0.0
    %1024 = vmatpush1.msra.mxu0 0.0
    %1025 = vmatprep.subr.mxu0 0.0
    %1026 = vmatpush1.msra.mxu0 0.0
    %1027 = vmatprep.subr.mxu0 0.0
    %1028 = vmatpush1.msra.mxu0 0.0
    %1029 = vmatprep.subr.mxu0 0.0
    %1030 = vmatpush1.msra.mxu0 0.0
    %1031 = vmatprep.subr.mxu0 0.0
    %1032 = vmatpush1.msra.mxu0 0.0
    %1033 = vmatprep.subr.mxu0 0.0
    %1034 = vmatpush1.msra.mxu0 0.0
    %1035 = vmatprep.subr.mxu0 0.0
    %1036 = vmatpush1.msra.mxu0 0.0
    %1037 = vmatprep.subr.mxu0 0.0
    %1038 = vmatpush1.msra.mxu0 0.0
    %1039 = vmatprep.subr.mxu0 0.0
    %1040 = vmatpush1.msra.mxu0 0.0
    %1041 = vmatprep.subr.mxu0 0.0
    %1042 = vmatpush1.msra.mxu0 0.0
    %1043 = vmatprep.mubr.f32.mxu0 0.0
    %1044 = vmatmul.mubr.f32.gmra.mrb[0].mxu0 %v977
    %v1045 = vpop.f32.mrb[0].mxu0
    %v1046 = vadd.f32 0.0, %v1045
    %v1047 = vpop.f32.mrb[0].mxu0
    %1048 = vdwg.mxu0
    %1049 = vrot.lane.b32.xlu0 %v120, 48
    %v1050 = vpop.permute.xlu0 %1049
    %v1053 = vsel %vm126, %v972, 0
    %1055 = vmatprep.subr.mxu0 0.0
    %1056 = vmatpush1.msra.mxu0 %v1050
    %1057 = vmatprep.subr.mxu0 0.0
    %1058 = vmatpush1.msra.mxu0 0.0
    %1059 = vmatprep.subr.mxu0 0.0
    %1060 = vmatpush1.msra.mxu0 0.0
    %1061 = vmatprep.subr.mxu0 0.0
    %1062 = vmatpush1.msra.mxu0 0.0
    %1063 = vmatprep.subr.mxu0 0.0
    %1064 = vmatpush1.msra.mxu0 0.0
    %1065 = vmatprep.subr.mxu0 0.0
    %1066 = vmatpush1.msra.mxu0 0.0
    %1067 = vmatprep.subr.mxu0 0.0
    %1068 = vmatpush1.msra.mxu0 0.0
    %1069 = vmatprep.subr.mxu0 0.0
    %1070 = vmatpush1.msra.mxu0 0.0
    %1071 = vmatprep.subr.mxu0 0.0
    %1072 = vmatpush1.msra.mxu0 0.0
    %1073 = vmatprep.subr.mxu0 0.0
    %1074 = vmatpush1.msra.mxu0 0.0
    %1075 = vmatprep.subr.mxu0 0.0
    %1076 = vmatpush1.msra.mxu0 0.0
    %1077 = vmatprep.subr.mxu0 0.0
    %1078 = vmatpush1.msra.mxu0 0.0
    %1079 = vmatprep.subr.mxu0 0.0
    %1080 = vmatpush1.msra.mxu0 0.0
    %1081 = vmatprep.subr.mxu0 0.0
    %1082 = vmatpush1.msra.mxu0 0.0
    %1083 = vmatprep.subr.mxu0 0.0
    %1084 = vmatpush1.msra.mxu0 0.0
    %1085 = vmatprep.subr.mxu0 0.0
    %1086 = vmatpush1.msra.mxu0 0.0
    %1087 = vmatprep.subr.mxu0 0.0
    %1088 = vmatpush1.msra.mxu0 0.0
    %1089 = vmatprep.subr.mxu0 0.0
    %1090 = vmatpush1.msra.mxu0 0.0
    %1091 = vmatprep.subr.mxu0 0.0
    %1092 = vmatpush1.msra.mxu0 0.0
    %1093 = vmatprep.subr.mxu0 0.0
    %1094 = vmatpush1.msra.mxu0 0.0
    %1095 = vmatprep.subr.mxu0 0.0
    %1096 = vmatpush1.msra.mxu0 0.0
    %1097 = vmatprep.subr.mxu0 0.0
    %1098 = vmatpush1.msra.mxu0 0.0
    %1099 = vmatprep.subr.mxu0 0.0
    %1100 = vmatpush1.msra.mxu0 0.0
    %1101 = vmatprep.subr.mxu0 0.0
    %1102 = vmatpush1.msra.mxu0 0.0
    %1103 = vmatprep.subr.mxu0 0.0
    %1104 = vmatpush1.msra.mxu0 0.0
    %1105 = vmatprep.subr.mxu0 0.0
    %1106 = vmatpush1.msra.mxu0 0.0
    %1107 = vmatprep.subr.mxu0 0.0
    %1108 = vmatpush1.msra.mxu0 0.0
    %1109 = vmatprep.subr.mxu0 0.0
    %1110 = vmatpush1.msra.mxu0 0.0
    %1111 = vmatprep.subr.mxu0 0.0
    %1112 = vmatpush1.msra.mxu0 0.0
    %1113 = vmatprep.subr.mxu0 0.0
    %1114 = vmatpush1.msra.mxu0 0.0
    %1115 = vmatprep.subr.mxu0 0.0
    %1116 = vmatpush1.msra.mxu0 0.0
    %1117 = vmatprep.subr.mxu0 0.0
    %1118 = vmatpush1.msra.mxu0 0.0
    %1119 = vmatprep.mubr.f32.mxu0 0.0
    %1120 = vmatmul.mubr.f32.gmra.mrb[0].mxu0 %v1053
    %v1121 = vpop.f32.mrb[0].mxu0
    %v1122 = vadd.f32 0.0, %v1121
    %v1123 = vpop.f32.mrb[0].mxu0
    %1124 = vdwg.mxu0
    %1127 = vrot.lane.b32.xlu0 %v1046, 16
    %v1128 = vpop.permute.xlu0 %1127
    %1129 = vrot.lane.b32.xlu0 %v1122, 16
    %v1130 = vpop.permute.xlu0 %1129
    %vm1133 = vcmask 195712
    %1134 = vst.msk [vmem:[#allocation2] sm:$0xff] %vm1133, %v1128
    %1135 = vst.msk [vmem:[#allocation2 + $0x8] sm:$0xff] %vm1133, %v1130
    %1136 = vrot.lane.b32.xlu0 %v115, 104
    %v1137 = vpop.permute.xlu0 %1136
    %1138 = vrot.lane.b32.xlu0 %v115, 72
    %v1139 = vpop.permute.xlu0 %1138
    %v1140 = vsel %vm126, %v1137, 0
    %v1142 = vsel %vm126, %v1139, 0
    %1144 = vmatprep.subr.mxu0 0.0
    %1145 = vmatpush1.xpose.msra.mxu0 %v1142
    %1146 = vmatprep.subr.mxu0 0.0
    %1147 = vmatpush1.xpose.msra.mxu0 0.0
    %1148 = vmatprep.subr.mxu0 0.0
    %1149 = vmatpush1.xpose.msra.mxu0 0.0
    %1150 = vmatprep.subr.mxu0 0.0
    %1151 = vmatpush1.xpose.msra.mxu0 0.0
    %1152 = vmatprep.subr.mxu0 0.0
    %1153 = vmatpush1.xpose.msra.mxu0 0.0
    %1154 = vmatprep.subr.mxu0 0.0
    %1155 = vmatpush1.xpose.msra.mxu0 0.0
    %1156 = vmatprep.subr.mxu0 0.0
    %1157 = vmatpush1.xpose.msra.mxu0 0.0
    %1158 = vmatprep.subr.mxu0 0.0
    %1159 = vmatpush1.xpose.msra.mxu0 0.0
    %1160 = vmatprep.subr.mxu0 0.0
    %1161 = vmatpush1.xpose.msra.mxu0 0.0
    %1162 = vmatprep.subr.mxu0 0.0
    %1163 = vmatpush1.xpose.msra.mxu0 0.0
    %1164 = vmatprep.subr.mxu0 0.0
    %1165 = vmatpush1.xpose.msra.mxu0 0.0
    %1166 = vmatprep.subr.mxu0 0.0
    %1167 = vmatpush1.xpose.msra.mxu0 0.0
    %1168 = vmatprep.subr.mxu0 0.0
    %1169 = vmatpush1.xpose.msra.mxu0 0.0
    %1170 = vmatprep.subr.mxu0 0.0
    %1171 = vmatpush1.xpose.msra.mxu0 0.0
    %1172 = vmatprep.subr.mxu0 0.0
    %1173 = vmatpush1.xpose.msra.mxu0 0.0
    %1174 = vmatprep.subr.mxu0 0.0
    %1175 = vmatpush1.xpose.msra.mxu0 0.0
    %1176 = vmatprep.subr.mxu0 0.0
    %1177 = vmatpush1.xpose.msra.mxu0 0.0
    %1178 = vmatprep.subr.mxu0 0.0
    %1179 = vmatpush1.xpose.msra.mxu0 0.0
    %1180 = vmatprep.subr.mxu0 0.0
    %1181 = vmatpush1.xpose.msra.mxu0 0.0
    %1182 = vmatprep.subr.mxu0 0.0
    %1183 = vmatpush1.xpose.msra.mxu0 0.0
    %1184 = vmatprep.subr.mxu0 0.0
    %1185 = vmatpush1.xpose.msra.mxu0 0.0
    %1186 = vmatprep.subr.mxu0 0.0
    %1187 = vmatpush1.xpose.msra.mxu0 0.0
    %1188 = vmatprep.subr.mxu0 0.0
    %1189 = vmatpush1.xpose.msra.mxu0 0.0
    %1190 = vmatprep.subr.mxu0 0.0
    %1191 = vmatpush1.xpose.msra.mxu0 0.0
    %1192 = vmatprep.subr.mxu0 0.0
    %1193 = vmatpush1.xpose.msra.mxu0 0.0
    %1194 = vmatprep.subr.mxu0 0.0
    %1195 = vmatpush1.xpose.msra.mxu0 0.0
    %1196 = vmatprep.subr.mxu0 0.0
    %1197 = vmatpush1.xpose.msra.mxu0 0.0
    %1198 = vmatprep.subr.mxu0 0.0
    %1199 = vmatpush1.xpose.msra.mxu0 0.0
    %1200 = vmatprep.subr.mxu0 0.0
    %1201 = vmatpush1.xpose.msra.mxu0 0.0
    %1202 = vmatprep.subr.mxu0 0.0
    %1203 = vmatpush1.xpose.msra.mxu0 0.0
    %1204 = vmatprep.subr.mxu0 0.0
    %1205 = vmatpush1.xpose.msra.mxu0 0.0
    %1206 = vmatprep.subr.mxu0 0.0
    %1207 = vmatpush1.xpose.msra.mxu0 0.0
    %1208 = vmatprep.mubr.f32.mxu0 0.0
    %1209 = vmatmul.mubr.f32.gmra.mrb[0].mxu0 %v1140
    %v1210 = vpop.f32.mrb[0].mxu0
    %v1211 = vadd.f32 0.0, %v1210
    %v1212 = vpop.f32.mrb[0].mxu0
    %1213 = vdwg.mxu0
    %1214 = vrot.lane.b32.xlu0 %v120, 104
    %v1215 = vpop.permute.xlu0 %1214
    %1216 = vrot.lane.b32.xlu0 %v120, 72
    %v1217 = vpop.permute.xlu0 %1216
    %v1218 = vsel %vm126, %v1215, 0
    %v1220 = vsel %vm126, %v1217, 0
    %1222 = vmatprep.subr.mxu0 0.0
    %1223 = vmatpush1.xpose.msra.mxu0 %v1220
    %1224 = vmatprep.subr.mxu0 0.0
    %1225 = vmatpush1.xpose.msra.mxu0 0.0
    %1226 = vmatprep.subr.mxu0 0.0
    %1227 = vmatpush1.xpose.msra.mxu0 0.0
    %1228 = vmatprep.subr.mxu0 0.0
    %1229 = vmatpush1.xpose.msra.mxu0 0.0
    %1230 = vmatprep.subr.mxu0 0.0
    %1231 = vmatpush1.xpose.msra.mxu0 0.0
    %1232 = vmatprep.subr.mxu0 0.0
    %1233 = vmatpush1.xpose.msra.mxu0 0.0
    %1234 = vmatprep.subr.mxu0 0.0
    %1235 = vmatpush1.xpose.msra.mxu0 0.0
    %1236 = vmatprep.subr.mxu0 0.0
    %1237 = vmatpush1.xpose.msra.mxu0 0.0
    %1238 = vmatprep.subr.mxu0 0.0
    %1239 = vmatpush1.xpose.msra.mxu0 0.0
    %1240 = vmatprep.subr.mxu0 0.0
    %1241 = vmatpush1.xpose.msra.mxu0 0.0
    %1242 = vmatprep.subr.mxu0 0.0
    %1243 = vmatpush1.xpose.msra.mxu0 0.0
    %1244 = vmatprep.subr.mxu0 0.0
    %1245 = vmatpush1.xpose.msra.mxu0 0.0
    %1246 = vmatprep.subr.mxu0 0.0
    %1247 = vmatpush1.xpose.msra.mxu0 0.0
    %1248 = vmatprep.subr.mxu0 0.0
    %1249 = vmatpush1.xpose.msra.mxu0 0.0
    %1250 = vmatprep.subr.mxu0 0.0
    %1251 = vmatpush1.xpose.msra.mxu0 0.0
    %1252 = vmatprep.subr.mxu0 0.0
    %1253 = vmatpush1.xpose.msra.mxu0 0.0
    %1254 = vmatprep.subr.mxu0 0.0
    %1255 = vmatpush1.xpose.msra.mxu0 0.0
    %1256 = vmatprep.subr.mxu0 0.0
    %1257 = vmatpush1.xpose.msra.mxu0 0.0
    %1258 = vmatprep.subr.mxu0 0.0
    %1259 = vmatpush1.xpose.msra.mxu0 0.0
    %1260 = vmatprep.subr.mxu0 0.0
    %1261 = vmatpush1.xpose.msra.mxu0 0.0
    %1262 = vmatprep.subr.mxu0 0.0
    %1263 = vmatpush1.xpose.msra.mxu0 0.0
    %1264 = vmatprep.subr.mxu0 0.0
    %1265 = vmatpush1.xpose.msra.mxu0 0.0
    %1266 = vmatprep.subr.mxu0 0.0
    %1267 = vmatpush1.xpose.msra.mxu0 0.0
    %1268 = vmatprep.subr.mxu0 0.0
    %1269 = vmatpush1.xpose.msra.mxu0 0.0
    %1270 = vmatprep.subr.mxu0 0.0
    %1271 = vmatpush1.xpose.msra.mxu0 0.0
    %1272 = vmatprep.subr.mxu0 0.0
    %1273 = vmatpush1.xpose.msra.mxu0 0.0
    %1274 = vmatprep.subr.mxu0 0.0
    %1275 = vmatpush1.xpose.msra.mxu0 0.0
    %1276 = vmatprep.subr.mxu0 0.0
    %1277 = vmatpush1.xpose.msra.mxu0 0.0
    %1278 = vmatprep.subr.mxu0 0.0
    %1279 = vmatpush1.xpose.msra.mxu0 0.0
    %1280 = vmatprep.subr.mxu0 0.0
    %1281 = vmatpush1.xpose.msra.mxu0 0.0
    %1282 = vmatprep.subr.mxu0 0.0
    %1283 = vmatpush1.xpose.msra.mxu0 0.0
    %1284 = vmatprep.subr.mxu0 0.0
    %1285 = vmatpush1.xpose.msra.mxu0 0.0
    %1286 = vmatprep.mubr.f32.mxu0 0.0
    %1287 = vmatmul.mubr.f32.gmra.mrb[0].mxu0 %v1218
    %v1288 = vpop.f32.mrb[0].mxu0
    %v1289 = vadd.f32 0.0, %v1288
    %v1290 = vpop.f32.mrb[0].mxu0
    %1291 = vdwg.mxu0
    %v1292 = vsel %vm126, %v1211, -inf
    %1293 = vmax.xlane.f32.xlu0 %v1292
    %v1294 = vpop.xlane.xlu0 %1293
    %v1295 = vsel %vm126, %v1289, -inf
    %1296 = vmax.xlane.f32.xlu0 %v1295
    %v1297 = vpop.xlane.xlu0 %1296
    %v1298 = vsub.f32 %v1211, %v1294
    %v1299 = vsub.f32 %v1289, %v1297
    %v1300 = vmul.f32 %v1298, 1.442695
    %v1301 = vpow.pop %v1300
    %v1302 = vmul.f32 %v1299, 1.442695
    %v1303 = vpow.pop %v1302
    %v1304 = vsel %vm126, %v1301, 0.0
    %1305 = vadd.xlane.f32.xlu0 %v1304
    %v1306 = vpop.xlane.xlu0 %1305
    %v1307 = vsel %vm126, %v1303, 0.0
    %1308 = vadd.xlane.f32.xlu0 %v1307
    %v1309 = vpop.xlane.xlu0 %1308
    %v1310 = vrcp.pop %v1306
    %v1311 = vrcp.pop %v1309
    %v1312 = vmul.f32 %v1301, %v1310
    %v1313 = vmul.f32 %v1303, %v1311
    %1314 = vrot.lane.b32.xlu0 %v115, 40
    %v1315 = vpop.permute.xlu0 %1314
    %v1318 = vsel %vm126, %v1312, 0
    %1320 = vmatprep.subr.mxu0 0.0
    %1321 = vmatpush1.msra.mxu0 %v1315
    %1322 = vmatprep.subr.mxu0 0.0
    %1323 = vmatpush1.msra.mxu0 0.0
    %1324 = vmatprep.subr.mxu0 0.0
    %1325 = vmatpush1.msra.mxu0 0.0
    %1326 = vmatprep.subr.mxu0 0.0
    %1327 = vmatpush1.msra.mxu0 0.0
    %1328 = vmatprep.subr.mxu0 0.0
    %1329 = vmatpush1.msra.mxu0 0.0
    %1330 = vmatprep.subr.mxu0 0.0
    %1331 = vmatpush1.msra.mxu0 0.0
    %1332 = vmatprep.subr.mxu0 0.0
    %1333 = vmatpush1.msra.mxu0 0.0
    %1334 = vmatprep.subr.mxu0 0.0
    %1335 = vmatpush1.msra.mxu0 0.0
    %1336 = vmatprep.subr.mxu0 0.0
    %1337 = vmatpush1.msra.mxu0 0.0
    %1338 = vmatprep.subr.mxu0 0.0
    %1339 = vmatpush1.msra.mxu0 0.0
    %1340 = vmatprep.subr.mxu0 0.0
    %1341 = vmatpush1.msra.mxu0 0.0
    %1342 = vmatprep.subr.mxu0 0.0
    %1343 = vmatpush1.msra.mxu0 0.0
    %1344 = vmatprep.subr.mxu0 0.0
    %1345 = vmatpush1.msra.mxu0 0.0
    %1346 = vmatprep.subr.mxu0 0.0
    %1347 = vmatpush1.msra.mxu0 0.0
    %1348 = vmatprep.subr.mxu0 0.0
    %1349 = vmatpush1.msra.mxu0 0.0
    %1350 = vmatprep.subr.mxu0 0.0
    %1351 = vmatpush1.msra.mxu0 0.0
    %1352 = vmatprep.subr.mxu0 0.0
    %1353 = vmatpush1.msra.mxu0 0.0
    %1354 = vmatprep.subr.mxu0 0.0
    %1355 = vmatpush1.msra.mxu0 0.0
    %1356 = vmatprep.subr.mxu0 0.0
    %1357 = vmatpush1.msra.mxu0 0.0
    %1358 = vmatprep.subr.mxu0 0.0
    %1359 = vmatpush1.msra.mxu0 0.0
    %1360 = vmatprep.subr.mxu0 0.0
    %1361 = vmatpush1.msra.mxu0 0.0
    %1362 = vmatprep.subr.mxu0 0.0
    %1363 = vmatpush1.msra.mxu0 0.0
    %1364 = vmatprep.subr.mxu0 0.0
    %1365 = vmatpush1.msra.mxu0 0.0
    %1366 = vmatprep.subr.mxu0 0.0
    %1367 = vmatpush1.msra.mxu0 0.0
    %1368 = vmatprep.subr.mxu0 0.0
    %1369 = vmatpush1.msra.mxu0 0.0
    %1370 = vmatprep.subr.mxu0 0.0
    %1371 = vmatpush1.msra.mxu0 0.0
    %1372 = vmatprep.subr.mxu0 0.0
    %1373 = vmatpush1.msra.mxu0 0.0
    %1374 = vmatprep.subr.mxu0 0.0
    %1375 = vmatpush1.msra.mxu0 0.0
    %1376 = vmatprep.subr.mxu0 0.0
    %1377 = vmatpush1.msra.mxu0 0.0
    %1378 = vmatprep.subr.mxu0 0.0
    %1379 = vmatpush1.msra.mxu0 0.0
    %1380 = vmatprep.subr.mxu0 0.0
    %1381 = vmatpush1.msra.mxu0 0.0
    %1382 = vmatprep.subr.mxu0 0.0
    %1383 = vmatpush1.msra.mxu0 0.0
    %1384 = vmatprep.mubr.f32.mxu0 0.0
    %1385 = vmatmul.mubr.f32.gmra.mrb[0].mxu0 %v1318
    %v1386 = vpop.f32.mrb[0].mxu0
    %v1387 = vadd.f32 0.0, %v1386
    %v1388 = vpop.f32.mrb[0].mxu0
    %1389 = vdwg.mxu0
    %1390 = vrot.lane.b32.xlu0 %v120, 40
    %v1391 = vpop.permute.xlu0 %1390
    %v1394 = vsel %vm126, %v1313, 0
    %1396 = vmatprep.subr.mxu0 0.0
    %1397 = vmatpush1.msra.mxu0 %v1391
    %1398 = vmatprep.subr.mxu0 0.0
    %1399 = vmatpush1.msra.mxu0 0.0
    %1400 = vmatprep.subr.mxu0 0.0
    %1401 = vmatpush1.msra.mxu0 0.0
    %1402 = vmatprep.subr.mxu0 0.0
    %1403 = vmatpush1.msra.mxu0 0.0
    %1404 = vmatprep.subr.mxu0 0.0
    %1405 = vmatpush1.msra.mxu0 0.0
    %1406 = vmatprep.subr.mxu0 0.0
    %1407 = vmatpush1.msra.mxu0 0.0
    %1408 = vmatprep.subr.mxu0 0.0
    %1409 = vmatpush1.msra.mxu0 0.0
    %1410 = vmatprep.subr.mxu0 0.0
    %1411 = vmatpush1.msra.mxu0 0.0
    %1412 = vmatprep.subr.mxu0 0.0
    %1413 = vmatpush1.msra.mxu0 0.0
    %1414 = vmatprep.subr.mxu0 0.0
    %1415 = vmatpush1.msra.mxu0 0.0
    %1416 = vmatprep.subr.mxu0 0.0
    %1417 = vmatpush1.msra.mxu0 0.0
    %1418 = vmatprep.subr.mxu0 0.0
    %1419 = vmatpush1.msra.mxu0 0.0
    %1420 = vmatprep.subr.mxu0 0.0
    %1421 = vmatpush1.msra.mxu0 0.0
    %1422 = vmatprep.subr.mxu0 0.0
    %1423 = vmatpush1.msra.mxu0 0.0
    %1424 = vmatprep.subr.mxu0 0.0
    %1425 = vmatpush1.msra.mxu0 0.0
    %1426 = vmatprep.subr.mxu0 0.0
    %1427 = vmatpush1.msra.mxu0 0.0
    %1428 = vmatprep.subr.mxu0 0.0
    %1429 = vmatpush1.msra.mxu0 0.0
    %1430 = vmatprep.subr.mxu0 0.0
    %1431 = vmatpush1.msra.mxu0 0.0
    %1432 = vmatprep.subr.mxu0 0.0
    %1433 = vmatpush1.msra.mxu0 0.0
    %1434 = vmatprep.subr.mxu0 0.0
    %1435 = vmatpush1.msra.mxu0 0.0
    %1436 = vmatprep.subr.mxu0 0.0
    %1437 = vmatpush1.msra.mxu0 0.0
    %1438 = vmatprep.subr.mxu0 0.0
    %1439 = vmatpush1.msra.mxu0 0.0
    %1440 = vmatprep.subr.mxu0 0.0
    %1441 = vmatpush1.msra.mxu0 0.0
    %1442 = vmatprep.subr.mxu0 0.0
    %1443 = vmatpush1.msra.mxu0 0.0
    %1444 = vmatprep.subr.mxu0 0.0
    %1445 = vmatpush1.msra.mxu0 0.0
    %1446 = vmatprep.subr.mxu0 0.0
    %1447 = vmatpush1.msra.mxu0 0.0
    %1448 = vmatprep.subr.mxu0 0.0
    %1449 = vmatpush1.msra.mxu0 0.0
    %1450 = vmatprep.subr.mxu0 0.0
    %1451 = vmatpush1.msra.mxu0 0.0
    %1452 = vmatprep.subr.mxu0 0.0
    %1453 = vmatpush1.msra.mxu0 0.0
    %1454 = vmatprep.subr.mxu0 0.0
    %1455 = vmatpush1.msra.mxu0 0.0
    %1456 = vmatprep.subr.mxu0 0.0
    %1457 = vmatpush1.msra.mxu0 0.0
    %1458 = vmatprep.subr.mxu0 0.0
    %1459 = vmatpush1.msra.mxu0 0.0
    %1460 = vmatprep.mubr.f32.mxu0 0.0
    %1461 = vmatmul.mubr.f32.gmra.mrb[0].mxu0 %v1394
    %v1462 = vpop.f32.mrb[0].mxu0
    %v1463 = vadd.f32 0.0, %v1462
    %v1464 = vpop.f32.mrb[0].mxu0
    %1465 = vdwg.mxu0
    %1468 = vrot.lane.b32.xlu0 %v1387, 24
    %v1469 = vpop.permute.xlu0 %1468
    %1470 = vrot.lane.b32.xlu0 %v1463, 24
    %v1471 = vpop.permute.xlu0 %1470
    %vm1474 = vcmask 261312
    %1475 = vst.msk [vmem:[#allocation2] sm:$0xff] %vm1474, %v1469
    %1476 = vst.msk [vmem:[#allocation2 + $0x8] sm:$0xff] %vm1474, %v1471
    %v1477 = vld [vmem:[#allocation2] sm:$0xff]
    %v1478 = vld [vmem:[#allocation2 + $0x8] sm:$0xff]
    %v1479 = vlaneseq
    %v1480 = vshrl.u32 %v1479, 7
    %v1481 = vsub.s32 1, %v1480
    %v1482 = vrot.slane %v36, %v1481
    %1487 = vrot.lane.b32.xlu0 %v20, 32
    %v1488 = vpop.permute.xlu0 %1487
    %1489 = vrot.lane.b32.xlu0 %v22, 32
    %v1490 = vpop.permute.xlu0 %1489
    %1491 = vrot.lane.b32.xlu0 %v24, 32
    %v1492 = vpop.permute.xlu0 %1491
    %1493 = vrot.lane.b32.xlu0 %v26, 32
    %v1494 = vpop.permute.xlu0 %1493
    %v1500 = vsel %vm41, %v1477, 0
    %v1503 = vsel %vm41, %v1478, 0
    %1505 = vmatprep.subr.mxu0 0.0
    %1506 = vmatpush1.msra.mxu0 %v1488
    %1507 = vmatprep.subr.mxu0 0.0
    %1508 = vmatpush1.msra.mxu0 %v1490
    %1509 = vmatprep.subr.mxu0 0.0
    %1510 = vmatpush1.msra.mxu0 %v1492
    %1511 = vmatprep.subr.mxu0 0.0
    %1512 = vmatpush1.msra.mxu0 %v1494
    %1513 = vmatprep.subr.mxu0 0.0
    %1514 = vmatpush1.msra.mxu0 0.0
    %1515 = vmatprep.subr.mxu0 0.0
    %1516 = vmatpush1.msra.mxu0 0.0
    %1517 = vmatprep.subr.mxu0 0.0
    %1518 = vmatpush1.msra.mxu0 0.0
    %1519 = vmatprep.subr.mxu0 0.0
    %1520 = vmatpush1.msra.mxu0 0.0
    %1521 = vmatprep.subr.mxu0 0.0
    %1522 = vmatpush1.msra.mxu0 0.0
    %1523 = vmatprep.subr.mxu0 0.0
    %1524 = vmatpush1.msra.mxu0 0.0
    %1525 = vmatprep.subr.mxu0 0.0
    %1526 = vmatpush1.msra.mxu0 0.0
    %1527 = vmatprep.subr.mxu0 0.0
    %1528 = vmatpush1.msra.mxu0 0.0
    %1529 = vmatprep.subr.mxu0 0.0
    %1530 = vmatpush1.msra.mxu0 0.0
    %1531 = vmatprep.subr.mxu0 0.0
    %1532 = vmatpush1.msra.mxu0 0.0
    %1533 = vmatprep.subr.mxu0 0.0
    %1534 = vmatpush1.msra.mxu0 0.0
    %1535 = vmatprep.subr.mxu0 0.0
    %1536 = vmatpush1.msra.mxu0 0.0
    %1537 = vmatprep.subr.mxu0 0.0
    %1538 = vmatpush1.msra.mxu0 0.0
    %1539 = vmatprep.subr.mxu0 0.0
    %1540 = vmatpush1.msra.mxu0 0.0
    %1541 = vmatprep.subr.mxu0 0.0
    %1542 = vmatpush1.msra.mxu0 0.0
    %1543 = vmatprep.subr.mxu0 0.0
    %1544 = vmatpush1.msra.mxu0 0.0
    %1545 = vmatprep.subr.mxu0 0.0
    %1546 = vmatpush1.msra.mxu0 0.0
    %1547 = vmatprep.subr.mxu0 0.0
    %1548 = vmatpush1.msra.mxu0 0.0
    %1549 = vmatprep.subr.mxu0 0.0
    %1550 = vmatpush1.msra.mxu0 0.0
    %1551 = vmatprep.subr.mxu0 0.0
    %1552 = vmatpush1.msra.mxu0 0.0
    %1553 = vmatprep.subr.mxu0 0.0
    %1554 = vmatpush1.msra.mxu0 0.0
    %1555 = vmatprep.subr.mxu0 0.0
    %1556 = vmatpush1.msra.mxu0 0.0
    %1557 = vmatprep.subr.mxu0 0.0
    %1558 = vmatpush1.msra.mxu0 0.0
    %1559 = vmatprep.subr.mxu0 0.0
    %1560 = vmatpush1.msra.mxu0 0.0
    %1561 = vmatprep.subr.mxu0 0.0
    %1562 = vmatpush1.msra.mxu0 0.0
    %1563 = vmatprep.subr.mxu0 0.0
    %1564 = vmatpush1.msra.mxu0 0.0
    %1565 = vmatprep.subr.mxu0 0.0
    %1566 = vmatpush1.msra.mxu0 0.0
    %1567 = vmatprep.subr.mxu0 0.0
    %1568 = vmatpush1.msra.mxu0 0.0
    %1569 = vmatprep.mubr.f32.mxu0 0.0
    %1570 = vmatmul.mubr.f32.gmra.mrb[0].mxu0 %v1500
    %v1571 = vpop.f32.mrb[0].mxu0
    %v1572 = vadd.f32 %v1482, %v1571
    %v1573 = vpop.f32.mrb[0].mxu0
    %1574 = vmatprep.mubr.f32.mxu0 0.0
    %1575 = vmatmul.mubr.f32.gmra.mrb[0].mxu0 %v1503
    %v1576 = vpop.f32.mrb[0].mxu0
    %v1577 = vadd.f32 %v1482, %v1576
    %v1578 = vpop.f32.mrb[0].mxu0
    %1579 = vdwg.mxu0
    %v1580 = vadd.f32 %v18, %v1572
    %v1581 = vadd.f32 %v19, %v1577
    %v1582 = vsel %vm41, %v1580, 0.0
    %1583 = vadd.xlane.f32.xlu0 %v1582
    %v1584 = vpop.xlane.xlu0 %1583
    %v1585 = vsel %vm41, %v1581, 0.0
    %1586 = vadd.xlane.f32.xlu0 %v1585
    %v1587 = vpop.xlane.xlu0 %1586
    %v1588 = vrcp.pop 32.0
    %v1589 = vmul.f32 %v1584, %v1588
    %v1590 = vmul.f32 %v1587, %v1588
    %v1591 = vsub.f32 %v1580, %v1589
    %v1592 = vsub.f32 %v1581, %v1590
    %v1593 = vmul.f32 %v1591, %v1591
    %v1594 = vmul.f32 %v1592, %v1592
    %v1595 = vsel %vm41, %v1593, 0.0
    %1596 = vadd.xlane.f32.xlu0 %v1595
    %v1597 = vpop.xlane.xlu0 %1596
    %v1598 = vsel %vm41, %v1594, 0.0
    %1599 = vadd.xlane.f32.xlu0 %v1598
    %v1600 = vpop.xlane.xlu0 %1599
    %v1601 = vmul.f32 %v1597, %v1588
    %v1602 = vmul.f32 %v1600, %v1588
    %v1603 = vadd.f32 %v1601, 1e-05
    %v1604 = vadd.f32 %v1602, 1e-05
    %v1605 = vrsqrt.pop %v1603
    %v1606 = vrsqrt.pop %v1604
    %v1607 = vmul.f32 %v1591, %v1605
    %v1608 = vmul.f32 %v1592, %v1606
    %v1609 = vlaneseq
    %v1610 = vshrl.u32 %v1609, 7
    %v1611 = vsub.s32 4, %v1610
    %v1612 = vrot.slane %v36, %v1611
    %v1613 = vmul.f32 %v1607, %v1612
    %v1614 = vmul.f32 %v1608, %v1612
    %v1615 = vlaneseq
    %v1616 = vshrl.u32 %v1615, 7
    %v1617 = vsub.s32 5, %v1616
    %v1618 = vrot.slane %v36, %v1617
    %v1619 = vadd.f32 %v1613, %v1618
    %v1620 = vadd.f32 %v1614, %v1618
    %v1621 = vlaneseq
    %v1622 = vshrl.u32 %v1621, 7
    %v1623 = vsub.s32 2, %v1622
    %v1624 = vrot.slane %v36, %v1623
    %v1626 = vsel %vm41, %v1619, 0
    %v1629 = vsel %vm41, %v1620, 0
    %1631 = vmatprep.subr.mxu0 0.0
    %1632 = vmatpush1.msra.mxu0 %v21
    %1633 = vmatprep.subr.mxu0 0.0
    %1634 = vmatpush1.msra.mxu0 %v23
    %1635 = vmatprep.subr.mxu0 0.0
    %1636 = vmatpush1.msra.mxu0 %v25
    %1637 = vmatprep.subr.mxu0 0.0
    %1638 = vmatpush1.msra.mxu0 %v27
    %1639 = vmatprep.subr.mxu0 0.0
    %1640 = vmatpush1.msra.mxu0 0.0
    %1641 = vmatprep.subr.mxu0 0.0
    %1642 = vmatpush1.msra.mxu0 0.0
    %1643 = vmatprep.subr.mxu0 0.0
    %1644 = vmatpush1.msra.mxu0 0.0
    %1645 = vmatprep.subr.mxu0 0.0
    %1646 = vmatpush1.msra.mxu0 0.0
    %1647 = vmatprep.subr.mxu0 0.0
    %1648 = vmatpush1.msra.mxu0 0.0
    %1649 = vmatprep.subr.mxu0 0.0
    %1650 = vmatpush1.msra.mxu0 0.0
    %1651 = vmatprep.subr.mxu0 0.0
    %1652 = vmatpush1.msra.mxu0 0.0
    %1653 = vmatprep.subr.mxu0 0.0
    %1654 = vmatpush1.msra.mxu0 0.0
    %1655 = vmatprep.subr.mxu0 0.0
    %1656 = vmatpush1.msra.mxu0 0.0
    %1657 = vmatprep.subr.mxu0 0.0
    %1658 = vmatpush1.msra.mxu0 0.0
    %1659 = vmatprep.subr.mxu0 0.0
    %1660 = vmatpush1.msra.mxu0 0.0
    %1661 = vmatprep.subr.mxu0 0.0
    %1662 = vmatpush1.msra.mxu0 0.0
    %1663 = vmatprep.subr.mxu0 0.0
    %1664 = vmatpush1.msra.mxu0 0.0
    %1665 = vmatprep.subr.mxu0 0.0
    %1666 = vmatpush1.msra.mxu0 0.0
    %1667 = vmatprep.subr.mxu0 0.0
    %1668 = vmatpush1.msra.mxu0 0.0
    %1669 = vmatprep.subr.mxu0 0.0
    %1670 = vmatpush1.msra.mxu0 0.0
    %1671 = vmatprep.subr.mxu0 0.0
    %1672 = vmatpush1.msra.mxu0 0.0
    %1673 = vmatprep.subr.mxu0 0.0
    %1674 = vmatpush1.msra.mxu0 0.0
    %1675 = vmatprep.subr.mxu0 0.0
    %1676 = vmatpush1.msra.mxu0 0.0
    %1677 = vmatprep.subr.mxu0 0.0
    %1678 = vmatpush1.msra.mxu0 0.0
    %1679 = vmatprep.subr.mxu0 0.0
    %1680 = vmatpush1.msra.mxu0 0.0
    %1681 = vmatprep.subr.mxu0 0.0
    %1682 = vmatpush1.msra.mxu0 0.0
    %1683 = vmatprep.subr.mxu0 0.0
    %1684 = vmatpush1.msra.mxu0 0.0
    %1685 = vmatprep.subr.mxu0 0.0
    %1686 = vmatpush1.msra.mxu0 0.0
    %1687 = vmatprep.subr.mxu0 0.0
    %1688 = vmatpush1.msra.mxu0 0.0
    %1689 = vmatprep.subr.mxu0 0.0
    %1690 = vmatpush1.msra.mxu0 0.0
    %1691 = vmatprep.subr.mxu0 0.0
    %1692 = vmatpush1.msra.mxu0 0.0
    %1693 = vmatprep.subr.mxu0 0.0
    %1694 = vmatpush1.msra.mxu0 0.0
    %1695 = vmatprep.mubr.f32.mxu0 0.0
    %1696 = vmatmul.mubr.f32.gmra.mrb[0].mxu0 %v1626
    %v1697 = vpop.f32.mrb[0].mxu0
    %v1698 = vadd.f32 %v1624, %v1697
    %v1699 = vpop.f32.mrb[0].mxu0
    %1700 = vmatprep.mubr.f32.mxu0 0.0
    %1701 = vmatmul.mubr.f32.gmra.mrb[0].mxu0 %v1629
    %v1702 = vpop.f32.mrb[0].mxu0
    %v1703 = vadd.f32 %v1624, %v1702
    %v1704 = vpop.f32.mrb[0].mxu0
    %1705 = vdwg.mxu0
    %v1706 = vmax.f32 %v1698, 0.0
    %v1707 = vmax.f32 %v1703, 0.0
    %v1708 = vlaneseq
    %v1709 = vshrl.u32 %v1708, 7
    %v1710 = vsub.s32 3, %v1709
    %v1711 = vrot.slane %v36, %v1710
    %vm1712 = vcmask 523264
    %v1714 = vsel %vm1712, %v1706, 0
    %v1717 = vsel %vm1712, %v1707, 0
    %1719 = vmatprep.subr.mxu0 0.0
    %1720 = vmatpush1.msra.mxu0 %v28
    %1721 = vmatprep.subr.mxu0 0.0
    %1722 = vmatpush1.msra.mxu0 %v29
    %1723 = vmatprep.subr.mxu0 0.0
    %1724 = vmatpush1.msra.mxu0 %v30
    %1725 = vmatprep.subr.mxu0 0.0
    %1726 = vmatpush1.msra.mxu0 %v31
    %1727 = vmatprep.subr.mxu0 0.0
    %1728 = vmatpush1.msra.mxu0 %v32
    %1729 = vmatprep.subr.mxu0 0.0
    %1730 = vmatpush1.msra.mxu0 %v33
    %1731 = vmatprep.subr.mxu0 0.0
    %1732 = vmatpush1.msra.mxu0 %v34
    %1733 = vmatprep.subr.mxu0 0.0
    %1734 = vmatpush1.msra.mxu0 %v35
    %1735 = vmatprep.subr.mxu0 0.0
    %1736 = vmatpush1.msra.mxu0 0.0
    %1737 = vmatprep.subr.mxu0 0.0
    %1738 = vmatpush1.msra.mxu0 0.0
    %1739 = vmatprep.subr.mxu0 0.0
    %1740 = vmatpush1.msra.mxu0 0.0
    %1741 = vmatprep.subr.mxu0 0.0
    %1742 = vmatpush1.msra.mxu0 0.0
    %1743 = vmatprep.subr.mxu0 0.0
    %1744 = vmatpush1.msra.mxu0 0.0
    %1745 = vmatprep.subr.mxu0 0.0
    %1746 = vmatpush1.msra.mxu0 0.0
    %1747 = vmatprep.subr.mxu0 0.0
    %1748 = vmatpush1.msra.mxu0 0.0
    %1749 = vmatprep.subr.mxu0 0.0
    %1750 = vmatpush1.msra.mxu0 0.0
    %1751 = vmatprep.subr.mxu0 0.0
    %1752 = vmatpush1.msra.mxu0 0.0
    %1753 = vmatprep.subr.mxu0 0.0
    %1754 = vmatpush1.msra.mxu0 0.0
    %1755 = vmatprep.subr.mxu0 0.0
    %1756 = vmatpush1.msra.mxu0 0.0
    %1757 = vmatprep.subr.mxu0 0.0
    %1758 = vmatpush1.msra.mxu0 0.0
    %1759 = vmatprep.subr.mxu0 0.0
    %1760 = vmatpush1.msra.mxu0 0.0
    %1761 = vmatprep.subr.mxu0 0.0
    %1762 = vmatpush1.msra.mxu0 0.0
    %1763 = vmatprep.subr.mxu0 0.0
    %1764 = vmatpush1.msra.mxu0 0.0
    %1765 = vmatprep.subr.mxu0 0.0
    %1766 = vmatpush1.msra.mxu0 0.0
    %1767 = vmatprep.subr.mxu0 0.0
    %1768 = vmatpush1.msra.mxu0 0.0
    %1769 = vmatprep.subr.mxu0 0.0
    %1770 = vmatpush1.msra.mxu0 0.0
    %1771 = vmatprep.subr.mxu0 0.0
    %1772 = vmatpush1.msra.mxu0 0.0
    %1773 = vmatprep.subr.mxu0 0.0
    %1774 = vmatpush1.msra.mxu0 0.0
    %1775 = vmatprep.subr.mxu0 0.0
    %1776 = vmatpush1.msra.mxu0 0.0
    %1777 = vmatprep.subr.mxu0 0.0
    %1778 = vmatpush1.msra.mxu0 0.0
    %1779 = vmatprep.subr.mxu0 0.0
    %1780 = vmatpush1.msra.mxu0 0.0
    %1781 = vmatprep.subr.mxu0 0.0
    %1782 = vmatpush1.msra.mxu0 0.0
    %1783 = vmatprep.mubr.f32.mxu0 0.0
    %1784 = vmatmul.mubr.f32.gmra.mrb[0].mxu0 %v1714
    %v1785 = vpop.f32.mrb[0].mxu0
    %v1786 = vadd.f32 %v1711, %v1785
    %v1787 = vpop.f32.mrb[0].mxu0
    %1788 = vmatprep.mubr.f32.mxu0 0.0
    %1789 = vmatmul.mubr.f32.gmra.mrb[0].mxu0 %v1717
    %v1790 = vpop.f32.mrb[0].mxu0
    %v1791 = vadd.f32 %v1711, %v1790
    %v1792 = vpop.f32.mrb[0].mxu0
    %1793 = vdwg.mxu0
    %v1794 = vadd.f32 %v1619, %v1786
    %v1795 = vadd.f32 %v1620, %v1791
    %v1796 = vsel %vm41, %v1794, 0.0
    %1797 = vadd.xlane.f32.xlu0 %v1796
    %v1798 = vpop.xlane.xlu0 %1797
    %v1799 = vsel %vm41, %v1795, 0.0
    %1800 = vadd.xlane.f32.xlu0 %v1799
    %v1801 = vpop.xlane.xlu0 %1800
    %v1802 = vmul.f32 %v1798, %v1588
    %v1803 = vmul.f32 %v1801, %v1588
    %v1804 = vsub.f32 %v1794, %v1802
    %v1805 = vsub.f32 %v1795, %v1803
    %v1806 = vmul.f32 %v1804, %v1804
    %v1807 = vmul.f32 %v1805, %v1805
    %v1808 = vsel %vm41, %v1806, 0.0
    %1809 = vadd.xlane.f32.xlu0 %v1808
    %v1810 = vpop.xlane.xlu0 %1809
    %v1811 = vsel %vm41, %v1807, 0.0
    %1812 = vadd.xlane.f32.xlu0 %v1811
    %v1813 = vpop.xlane.xlu0 %1812
    %v1814 = vmul.f32 %v1810, %v1588
    %v1815 = vmul.f32 %v1813, %v1588
    %v1816 = vadd.f32 %v1814, 1e-05
    %v1817 = vadd.f32 %v1815, 1e-05
    %v1818 = vrsqrt.pop %v1816
    %v1819 = vrsqrt.pop %v1817
    %v1820 = vmul.f32 %v1804, %v1818
    %v1821 = vmul.f32 %v1805, %v1819
    %v1822 = vlaneseq
    %v1823 = vshrl.u32 %v1822, 7
    %v1824 = vsub.s32 6, %v1823
    %v1825 = vrot.slane %v36, %v1824
    %v1826 = vmul.f32 %v1820, %v1825
    %v1827 = vmul.f32 %v1821, %v1825
    %v1828 = vlaneseq
    %v1829 = vshrl.u32 %v1828, 7
    %v1830 = vsub.s32 7, %v1829
    %v1831 = vrot.slane %v36, %v1830
    %v1832 = vadd.f32 %v1826, %v1831
    %v1833 = vadd.f32 %v1827, %v1831
    %1834 = vst.msk [vmem:[#allocation3] sm:$0xff] %vm41, %v1832
    %1835 = vst.msk [vmem:[#allocation3 + $0x8] sm:$0xff] %vm41, %v1833
    // Predicated region
    $region18: #{tpu_custom_call.1} parent=1 // pred_check
      _
    $region19: #{tpu_custom_call.1} parent=1 // pred_check_branch
      %1837 = sbr.rel (0) target = $region21
    $region20: #{tpu_custom_call.1} parent=1 // pred_region
      %s1839 = ssub.s32 256, 256
      %1840 = vsyncadd [#allocation4], %s1839
      %s1841 = sshll.u32 [#allocation3], 4
      %s1842 = int_to_ptr.vmem [resolvable:$true] %s1841
      %1847 = dma.vmem_to_hbm [thread:$0]  %s1842, 256, %s4, [#allocation4], 128, 128, 8
    $region21: #{tpu_custom_call.1} parent=1 // pred_fallthru
      _
    // Predicated region
    $region22: #{tpu_custom_call.1} parent=1 // pred_check
      _
    $region23: #{tpu_custom_call.1} parent=1 // pred_check_branch
      %1849 = sbr.rel (0) target = $region25
    $region24: #{tpu_custom_call.1} parent=1 // pred_region
      %1850 = dma.done [#allocation4], 256
    $region25: #{tpu_custom_call.1} parent=1 // pred_fallthru
      _
    %1851 = vsyncpa [#allocation4], 1

</llo_original>
